<compile_context>
chip_gen: v5e
topology: v5e:2x2
jax: 0.10.0
libtpu: 0.0.40
codegen_flags: <defaults>
</compile_context>

<pallas_src>
import math
from functools import partial

import numpy as np
import jax
import jax.numpy as jnp
from jax import lax
from jax.experimental import pallas as pl
from jax.experimental.pallas import tpu as pltpu

# ----- static configuration (small shapes consistent with the module) -----
DIM = 4                 # dim
K = 5                   # spline bins
B = 3.0                 # tail bound (module default B=3)
HID = 8                 # hidden_dim
NUM_COND = 3            # num_cond
NFLOWS = 2              # nflows
N = 8                   # small demo batch
OUT_FLOW = 3 * K - 1                     # 14 outputs per flow network
NNET_PER_DIM = 1 + NFLOWS                # init net + flow nets
NNET = DIM * NNET_PER_DIM                # 12 networks total
HTOT = NNET * HID                        # 96 useful hidden lanes
TOT_OUT = 2 * DIM + NFLOWS * OUT_FLOW * DIM   # 120 useful output lanes

HPAD = 128              # padded hidden / output lane width (single MXU pass)
WH_BASE = 2 * DIM                        # 8   : start of packed W/H block
D_BASE = WH_BASE + 16 * K                # 88  : start of packed D block
assert D_BASE + NFLOWS * (K - 1) * DIM <= HPAD

# packed-parameter buffer row offsets (8-row aligned sections)
R_W1C = 0
R_W1X = NUM_COND                         # 3
R_B1 = NUM_COND + DIM                    # 7
R_W2 = 8
R_B2 = R_W2 + HPAD                       # 136
R_W3 = R_B2 + 8                          # 144
R_B3 = R_W3 + HPAD                       # 272
PROWS = R_B3 + 8                         # 280

MIN_BIN_WIDTH = 1e-3
MIN_BIN_HEIGHT = 1e-3
MIN_DERIVATIVE = 1e-3
# joint W/H slab processing relies on identical min-bin constants
assert MIN_BIN_WIDTH == MIN_BIN_HEIGHT

ROW_TILE = 256          # batch tile for the gridded (large-N) path


# ================================ kernel ==================================

def _nsf_kernel(cond_ref, x_ref, p_ref, *rest, has_mask):
    if has_mask:
        mask_ref, out_ref = rest
    else:
        mask_ref = None
        (out_ref,) = rest

    C = cond_ref[...].astype(jnp.float32)          # (n, NUM_COND)
    X = x_ref[...].astype(jnp.float32)             # (n, DIM)

    # ---- single packed parameter buffer, static slices ----
    w1c = p_ref[R_W1C:R_W1C + NUM_COND, :]         # (3, 128)
    w1x = p_ref[R_W1X:R_W1X + DIM, :]              # (4, 128)
    b1 = p_ref[R_B1:R_B1 + 1, :]                   # (1, 128)
    w2 = p_ref[R_W2:R_W2 + HPAD, :]                # (128, 128)
    b2 = p_ref[R_B2:R_B2 + 1, :]
    w3 = p_ref[R_W3:R_W3 + HPAD, :]                # (128, 128)
    b3 = p_ref[R_B3:R_B3 + 1, :]

    # ---- fused MLP stack for all 12 tiny networks (4 MXU matmuls) ----
    h1 = jnp.tanh(jnp.dot(C, w1c, preferred_element_type=jnp.float32)
                  + jnp.dot(X, w1x, preferred_element_type=jnp.float32) + b1)
    h2 = jnp.tanh(jnp.dot(h1, w2, preferred_element_type=jnp.float32) + b2)
    out = jnp.dot(h2, w3, preferred_element_type=jnp.float32) + b3   # (n, 128)

    mu = out[:, 0:DIM]
    alpha = out[:, DIM:2 * DIM]

    # ===== Phase A: x-independent spline parameters, both flows at once =====
    # per-bin 16-lane slabs: [W_f0 | W_f1 | H_f0 | H_f1]
    wh = [out[:, WH_BASE + 16 * k: WH_BASE + 16 * (k + 1)] for k in range(K)]

    # module softmax over bins (* 2B)
    m = wh[0]
    for s in wh[1:]:
        m = jnp.maximum(m, s)
    e = [jnp.exp(s - m) for s in wh]
    tot = e[0]
    for t in e[1:]:
        tot = tot + t
    scale1 = (2.0 * B) / tot
    s1 = [t * scale1 for t in e]

    # RQS-internal softmax (inputs bounded in [0, 2B]; max-shift unnecessary)
    e2 = [jnp.exp(t) for t in s1]
    tot2 = e2[0]
    for t in e2[1:]:
        tot2 = tot2 + t
    scale2 = (1.0 - MIN_BIN_WIDTH * K) / tot2
    wdt = [MIN_BIN_WIDTH + t * scale2 for t in e2]   # widths & heights, packed

    # interior knots 1..K-1, lane-packed [cw_f0 | cw_f1 | ch_f0 | ch_f1]
    kn = []
    acc = wdt[0]
    kn.append(-B + 2.0 * B * acc)
    for k in range(1, K - 1):
        acc = acc + wdt[k]
        kn.append(-B + 2.0 * B * acc)

    # interior-knot derivatives: MIN_D + softplus(softplus(raw)), one 32-lane block
    d_raw = out[:, D_BASE:D_BASE + NFLOWS * (K - 1) * DIM]
    d_in = MIN_DERIVATIVE + jax.nn.softplus(jax.nn.softplus(d_raw))

    # ===== Phase B: x-dependent RQS evaluation, sequential over flows =====
    left, right = -B, B
    bottom, top = -B, B
    x = X
    logdet = jnp.zeros_like(X)
    for jf in range(NFLOWS):
        o = DIM * jf
        cw = [kn[k][:, o:o + DIM] for k in range(K - 1)]
        ch = [kn[k][:, 2 * DIM + o:2 * DIM + o + DIM] for k in range(K - 1)]
        dd = [d_in[:, 2 * DIM * k + o:2 * DIM * k + o + DIM] for k in range(K - 1)]

        inside = (x >= left) & (x <= right)
        xc = jnp.clip(x, left, right)

        # shared interval masks: exactly one-hot over the K bins
        cf = [jnp.where(xc >= cw[k], 1.0, 0.0) for k in range(K - 1)]
        fm = [1.0 - cf[0]]
        for j in range(1, K - 1):
            fm.append(cf[j - 1] - cf[j])
        fm.append(cf[K - 2])

        def gather_lo(vals, lo_val, fm=fm):
            r = fm[0] * lo_val
            for j in range(1, K):
                r = r + fm[j] * vals[j - 1]
            return r

        def gather_hi(vals, hi_val, fm=fm):
            r = fm[K - 1] * hi_val
            for j in range(K - 1):
                r = r + fm[j] * vals[j]
            return r

        in_cw = gather_lo(cw, left)
        in_bw = gather_hi(cw, right) - in_cw
        in_ch = gather_lo(ch, bottom)
        in_h = gather_hi(ch, top) - in_ch
        in_d = gather_lo(dd, 1.0)        # boundary derivative == 1 exactly
        in_d1 = gather_hi(dd, 1.0)

        inv_bw = 1.0 / in_bw
        in_delta = in_h * inv_bw
        theta = (xc - in_cw) * inv_bw
        tomt = theta * (1.0 - theta)
        numer = in_h * (in_delta * theta * theta + in_d * tomt)
        denom = in_delta + (in_d + in_d1 - 2.0 * in_delta) * tomt
        y = in_ch + numer / denom
        dnum = (in_delta * in_delta) * (in_d1 * theta * theta
                                        + 2.0 * in_delta * tomt
                                        + in_d * (1.0 - theta) * (1.0 - theta))
        ld = jnp.log(dnum) - 2.0 * jnp.log(denom)

        x = jnp.where(inside, y, x)
        logdet = logdet + jnp.where(inside, ld, 0.0)

    # ---- Gumbel(mu, exp(alpha)).log_prob(x); reuse alpha == log(sig) ----
    inv_sig = jnp.exp(-alpha)
    yb = (mu - x) * inv_sig
    lp = yb - jnp.exp(yb) - alpha
    lp = jnp.where(jnp.isnan(lp) | jnp.isinf(lp), -100.0, lp)

    logp = logdet + lp
    if has_mask:
        logp = logp * mask_ref[...].astype(jnp.float32)
    out_ref[...] = jnp.sum(logp, axis=1, keepdims=True)   # fold dim-sum in-kernel


# =============================== wrapper ==================================

def nsf_forward(params, x_inp, cond_inp, mask=None):
    """logp = sum_jd [ log|det| + Gumbel.log_prob ], shape (N,)."""
    x_inp = x_inp.astype(jnp.float32)
    cond_inp = cond_inp.astype(jnp.float32)
    n = x_inp.shape[0]
    has_mask = mask is not None
    kern = partial(_nsf_kernel, has_mask=has_mask)

    inputs = [cond_inp, x_inp, params]
    if has_mask:
        inputs.append(mask.astype(jnp.float32))

    flops = 2 * n * (NUM_COND * HPAD + DIM * HPAD + 2 * HPAD * HPAD)
    bytes_accessed = 4 * (n * (NUM_COND + DIM + 1) + PROWS * 128
                          + (n * DIM if has_mask else 0))
    ce = pl.CostEstimate(flops=flops, transcendentals=n * 300,
                         bytes_accessed=bytes_accessed)

    if n > ROW_TILE and n % ROW_TILE == 0:
        # large batch: parallel row grid (uses both TensorCores on v7x);
        # packed weights keep a constant index_map -> single DMA.
        in_specs = [
            pl.BlockSpec((ROW_TILE, NUM_COND), lambda i: (i, 0)),
            pl.BlockSpec((ROW_TILE, DIM), lambda i: (i, 0)),
            pl.BlockSpec((PROWS, 128), lambda i: (0, 0)),
        ]
        if has_mask:
            in_specs.append(pl.BlockSpec((ROW_TILE, DIM), lambda i: (i, 0)))
        logp = pl.pallas_call(
            kern,
            out_shape=jax.ShapeDtypeStruct((n, 1), jnp.float32),
            grid=(n // ROW_TILE,),
            in_specs=in_specs,
            out_specs=pl.BlockSpec((ROW_TILE, 1), lambda i: (i, 0)),
            compiler_params=pltpu.CompilerParams(
                dimension_semantics=("parallel",)),
            cost_estimate=ce,
        )(*inputs)
    else:
        # small batch: single invocation, everything VMEM-resident
        vspec = lambda: pl.BlockSpec(memory_space=pltpu.MemorySpace.VMEM)
        logp = pl.pallas_call(
            kern,
            out_shape=jax.ShapeDtypeStruct((n, 1), jnp.float32),
            in_specs=[vspec() for _ in inputs],
            out_specs=vspec(),
            cost_estimate=ce,
        )(*inputs)

    return logp[:, 0]


# ==================== host-side weight init & packing =====================

def init_params(key):
    """Deterministic synthetic init (PyTorch-Linear-style uniform bounds),
    packed into ONE (PROWS, 128) buffer: [W1c;W1x;b1 | W2 | b2 | W3 | b3]."""
    def linear(k, fan_in, fan_out):
        kw, kb = jax.random.split(k)
        bound = 1.0 / math.sqrt(fan_in)
        w = jax.random.uniform(kw, (fan_in, fan_out), jnp.float32, -bound, bound)
        b = jax.random.uniform(kb, (fan_out,), jnp.float32, -bound, bound)
        return np.asarray(w), np.asarray(b)

    w1c = np.zeros((NUM_COND, HPAD), np.float32)
    w1x = np.zeros((DIM, HPAD), np.float32)
    b1 = np.zeros((HPAD,), np.float32)
    w2 = np.zeros((HPAD, HPAD), np.float32)
    b2 = np.zeros((HPAD,), np.float32)
    w3 = np.zeros((HPAD, HPAD), np.float32)
    b3 = np.zeros((HPAD,), np.float32)

    raw = {"init": [], "flows": []}   # unpadded weights for the pure-JAX reference
    keys = jax.random.split(key, DIM * (3 + 3 * NFLOWS))
    ki = 0
    for jd in range(DIM):
        cin = NUM_COND + jd

        # --- init (Gumbel parameter) network of dim jd ---
        a1, c1 = linear(keys[ki], cin, HID); ki += 1
        a2, c2 = linear(keys[ki], HID, HID); ki += 1
        a3, c3 = linear(keys[ki], HID, 2);   ki += 1
        net = jd * NNET_PER_DIM
        sl = slice(net * HID, (net + 1) * HID)
        w1c[:, sl] = a1[:NUM_COND, :]
        w1x[:jd, sl] = a1[NUM_COND:, :]      # zero-padded autoregressive input
        b1[sl] = c1
        w2[sl, sl] = a2; b2[sl] = c2
        w3[sl, jd] = a3[:, 0];       b3[jd] = c3[0]            # mu
        w3[sl, DIM + jd] = a3[:, 1]; b3[DIM + jd] = c3[1]      # alpha
        raw["init"].append((a1, c1, a2, c2, a3, c3))

        # --- flow networks of dim jd ---
        flows_jd = []
        for jf in range(NFLOWS):
            f1, g1 = linear(keys[ki], cin, HID);      ki += 1
            f2, g2 = linear(keys[ki], HID, HID);      ki += 1
            f3, g3 = linear(keys[ki], HID, OUT_FLOW); ki += 1
            net = jd * NNET_PER_DIM + 1 + jf
            sl = slice(net * HID, (net + 1) * HID)
            w1c[:, sl] = f1[:NUM_COND, :]
            w1x[:jd, sl] = f1[NUM_COND:, :]
            b1[sl] = g1
            w2[sl, sl] = f2; b2[sl] = g2
            # column layout: per-bin 16-lane groups [W_f0|W_f1|H_f0|H_f1],
            # then per-bin 8-lane groups [D_f0|D_f1]
            for k in range(K):
                colW = WH_BASE + 16 * k + DIM * jf + jd
                colH = WH_BASE + 16 * k + 2 * DIM + DIM * jf + jd
                w3[sl, colW] = f3[:, k];     b3[colW] = g3[k]
                w3[sl, colH] = f3[:, K + k]; b3[colH] = g3[K + k]
            for k in range(K - 1):
                colD = D_BASE + 2 * DIM * k + DIM * jf + jd
                w3[sl, colD] = f3[:, 2 * K + k]; b3[colD] = g3[2 * K + k]
            flows_jd.append((f1, g1, f2, g2, f3, g3))
        raw["flows"].append(flows_jd)

    P = np.zeros((PROWS, 128), np.float32)
    P[R_W1C:R_W1C + NUM_COND] = w1c
    P[R_W1X:R_W1X + DIM] = w1x
    P[R_B1] = b1
    P[R_W2:R_W2 + HPAD] = w2
    P[R_B2] = b2
    P[R_W3:R_W3 + HPAD] = w3
    P[R_B3] = b3
    return jnp.asarray(P), raw


# ===================== pure-JAX reference (self-check) =====================

def _mlp_ref(inp, w1, b1, w2, b2, w3, b3):
    h = jnp.tanh(jnp.dot(inp, w1, preferred_element_type=jnp.float32) + b1)
    h = jnp.tanh(jnp.dot(h, w2, preferred_element_type=jnp.float32) + b2)
    return jnp.dot(h, w3, preferred_element_type=jnp.float32) + b3


def _rqs_forward_ref(x, w_un, h_un, d_un, tail_bound):
    """Per-dimension reference RQS (cumsum-by-matmul / one-hot gathers)."""
    left = -tail_bound; right = tail_bound
    bottom = -tail_bound; top = tail_bound
    nb = w_un.shape[1]

    inside = (x >= left) & (x <= right)
    xc = jnp.clip(x, left, right)

    r = lax.broadcasted_iota(jnp.int32, (nb, nb), 0)
    c = lax.broadcasted_iota(jnp.int32, (nb, nb), 1)
    tri = (r <= c).astype(jnp.float32)

    widths = jax.nn.softmax(w_un, axis=-1)
    widths = MIN_BIN_WIDTH + (1.0 - MIN_BIN_WIDTH * nb) * widths
    cw = jnp.dot(widths, tri, preferred_element_type=jnp.float32)
    cw_mid = left + (right - left) * cw[:, : nb - 1]

    heights = jax.nn.softmax(h_un, axis=-1)
    heights = MIN_BIN_HEIGHT + (1.0 - MIN_BIN_HEIGHT * nb) * heights
    ch = jnp.dot(heights, tri, preferred_element_type=jnp.float32)
    ch_mid = bottom + (top - bottom) * ch[:, : nb - 1]

    d_inner = MIN_DERIVATIVE + jax.nn.softplus(d_un)

    bin_idx = jnp.sum((xc >= cw_mid).astype(jnp.int32), axis=1, keepdims=True)
    knot_ids = lax.broadcasted_iota(jnp.int32, (x.shape[0], nb + 1), 1)
    oh_lo = (knot_ids == bin_idx).astype(jnp.float32)
    oh_hi = (knot_ids == (bin_idx + 1)).astype(jnp.float32)

    def gather_knot(oh, mid, lv, rv):
        return (oh[:, 0:1] * lv
                + jnp.sum(oh[:, 1:nb] * mid, axis=1, keepdims=True)
                + oh[:, nb:nb + 1] * rv)

    in_cw = gather_knot(oh_lo, cw_mid, left, right)
    in_bw = gather_knot(oh_hi, cw_mid, left, right) - in_cw
    in_ch = gather_knot(oh_lo, ch_mid, bottom, top)
    in_h = gather_knot(oh_hi, ch_mid, bottom, top) - in_ch
    in_delta = in_h / in_bw
    in_d = gather_knot(oh_lo, d_inner, 1.0, 1.0)
    in_d1 = gather_knot(oh_hi, d_inner, 1.0, 1.0)

    theta = (xc - in_cw) / in_bw
    tomt = theta * (1.0 - theta)
    numer = in_h * (in_delta * theta * theta + in_d * tomt)
    denom = in_delta + (in_d + in_d1 - 2.0 * in_delta) * tomt
    y = in_ch + numer / denom
    dnum = (in_delta * in_delta) * (in_d1 * theta * theta + 2.0 * in_delta * tomt
                                    + in_d * (1.0 - theta) * (1.0 - theta))
    ld = jnp.log(dnum) - 2.0 * jnp.log(denom)

    z = jnp.where(inside, y, x)
    ld = jnp.where(inside, ld, 0.0)
    return z, ld


def forward_ref(raw, x_inp, cond_inp, mask=None):
    """Pure-JAX mirror of the PyTorch forward (plumbing/packing self-check)."""
    n = x_inp.shape[0]
    cols = []
    for jd in range(DIM):
        cond_jd = cond_inp if jd == 0 else jnp.concatenate(
            [cond_inp, x_inp[:, :jd]], axis=1)
        w1, b1, w2, b2, w3, b3 = raw["init"][jd]
        out_i = _mlp_ref(cond_jd, w1, b1, w2, b2, w3, b3)
        mu = out_i[:, 0:1]
        sig = jnp.exp(out_i[:, 1:2])
        x = x_inp[:, jd:jd + 1]
        logdet = jnp.zeros((n, 1), jnp.float32)
        for jf in range(NFLOWS):
            a1, c1, a2, c2, a3, c3 = raw["flows"][jd][jf]
            out_f = _mlp_ref(cond_jd, a1, c1, a2, c2, a3, c3)
            w_un = 2.0 * B * jax.nn.softmax(out_f[:, :K], axis=1)
            h_un = 2.0 * B * jax.nn.softmax(out_f[:, K:2 * K], axis=1)
            d_un = jax.nn.softplus(out_f[:, 2 * K:3 * K - 1])
            z, ld = _rqs_forward_ref(x, w_un, h_un, d_un, B)
            logdet = logdet + ld
            x = z
        y = (mu - x) / sig
        lpj = y - jnp.exp(y) - jnp.log(sig)
        lpj = jnp.where(jnp.isnan(lpj) | jnp.isinf(lpj), -100.0, lpj)
        cols.append(logdet + lpj)
    logp = jnp.concatenate(cols, axis=1)
    if mask is not None:
        logp = logp * mask
    return jnp.sum(logp, axis=1)


# TODO(synk): inverse()/sample() (RNG-driven base-distribution sampling paths)
# are not part of the forward pass and are not implemented; nn.Parameter
# `init_param` is unused by forward and therefore omitted.

if __name__ == "__main__":
    key = jax.random.PRNGKey(0)
    kp, kx, kc, km, kx2, kc2 = jax.random.split(key, 6)
    params, raw = init_params(kp)

    # --- small batch: single-invocation path ---
    x_inp = 1.5 * jax.random.normal(kx, (N, DIM), jnp.float32)
    cond_inp = jax.random.normal(kc, (N, NUM_COND), jnp.float32)
    out = jax.block_until_ready(nsf_forward(params, x_inp, cond_inp))
    ref = forward_ref(raw, x_inp, cond_inp)
    np.testing.assert_allclose(np.asarray(out), np.asarray(ref),
                               rtol=3e-4, atol=3e-4)

    # --- masked variant (mask + dim-sum folded into the kernel) ---
    mask = (jax.random.uniform(km, (N, DIM)) > 0.3).astype(jnp.float32)
    out_m = jax.block_until_ready(nsf_forward(params, x_inp, cond_inp, mask=mask))
    ref_m = forward_ref(raw, x_inp, cond_inp, mask=mask)
    np.testing.assert_allclose(np.asarray(out_m), np.asarray(ref_m),
                               rtol=3e-4, atol=3e-4)

    # --- large batch: parallel row-gridded path (v7x megacore) ---
    NB = 512
    x_big = 1.5 * jax.random.normal(kx2, (NB, DIM), jnp.float32)
    c_big = jax.random.normal(kc2, (NB, NUM_COND), jnp.float32)
    out_b = jax.block_until_ready(nsf_forward(params, x_big, c_big))
    ref_b = forward_ref(raw, x_big, c_big)
    np.testing.assert_allclose(np.asarray(out_b), np.asarray(ref_b),
                               rtol=3e-4, atol=3e-4)

    print("KERNEL_OK")
</pallas_src>

<mosaic_0001>
module attributes {stable_mosaic.version = 11 : i64} {
  func.func @_nsf_kernel(%arg0: memref<8x3xf32, #tpu.memory_space<vmem>>, %arg1: memref<8x4xf32, #tpu.memory_space<vmem>>, %arg2: memref<280x128xf32, #tpu.memory_space<vmem>>, %arg3: memref<8x1xf32, #tpu.memory_space<vmem>>) attributes {dimension_semantics = [], scalar_prefetch = 0 : i64, scratch_operands = 0 : i64, tpu.core_type = #tpu.core_type<tc>} {
    %c0 = arith.constant 0 : index
    %c0_0 = arith.constant 0 : index
    %0 = vector.load %arg0[%c0, %c0_0] : memref<8x3xf32, #tpu.memory_space<vmem>>, vector<8x3xf32>
    %c0_1 = arith.constant 0 : index
    %c0_2 = arith.constant 0 : index
    %1 = vector.load %arg1[%c0_1, %c0_2] : memref<8x4xf32, #tpu.memory_space<vmem>>, vector<8x4xf32>
    %c0_3 = arith.constant 0 : index
    %c0_4 = arith.constant 0 : index
    %2 = vector.load %arg2[%c0_3, %c0_4] : memref<280x128xf32, #tpu.memory_space<vmem>>, vector<3x128xf32>
    %c3 = arith.constant 3 : index
    %c0_5 = arith.constant 0 : index
    %3 = vector.load %arg2[%c3, %c0_5] : memref<280x128xf32, #tpu.memory_space<vmem>>, vector<4x128xf32>
    %c7 = arith.constant 7 : index
    %c0_6 = arith.constant 0 : index
    %4 = vector.load %arg2[%c7, %c0_6] : memref<280x128xf32, #tpu.memory_space<vmem>>, vector<1x128xf32>
    %c8 = arith.constant 8 : index
    %c0_7 = arith.constant 0 : index
    %5 = vector.load %arg2[%c8, %c0_7] : memref<280x128xf32, #tpu.memory_space<vmem>>, vector<128x128xf32>
    %c136 = arith.constant 136 : index
    %c0_8 = arith.constant 0 : index
    %6 = vector.load %arg2[%c136, %c0_8] : memref<280x128xf32, #tpu.memory_space<vmem>>, vector<1x128xf32>
    %c144 = arith.constant 144 : index
    %c0_9 = arith.constant 0 : index
    %7 = vector.load %arg2[%c144, %c0_9] : memref<280x128xf32, #tpu.memory_space<vmem>>, vector<128x128xf32>
    %c272 = arith.constant 272 : index
    %c0_10 = arith.constant 0 : index
    %8 = vector.load %arg2[%c272, %c0_10] : memref<280x128xf32, #tpu.memory_space<vmem>>, vector<1x128xf32>
    %cst = arith.constant dense<0.000000e+00> : vector<8x128xf32>
    %9 = tpu.matmul %0, %2, %cst {dimension_numbers = #tpu.dot_dimension_numbers<[1], [0], [0], [1], [0, 0, 1, 1], [], []>} : vector<8x3xf32>, vector<3x128xf32>, vector<8x128xf32> -> vector<8x128xf32>
    %cst_11 = arith.constant dense<0.000000e+00> : vector<8x128xf32>
    %10 = tpu.matmul %1, %3, %cst_11 {dimension_numbers = #tpu.dot_dimension_numbers<[1], [0], [0], [1], [0, 0, 1, 1], [], []>} : vector<8x4xf32>, vector<4x128xf32>, vector<8x128xf32> -> vector<8x128xf32>
    %11 = arith.addf %9, %10 : vector<8x128xf32>
    %12 = vector.broadcast %4 : vector<1x128xf32> to vector<8x128xf32>
    %13 = arith.addf %11, %12 : vector<8x128xf32>
    %14 = math.tanh %13 : vector<8x128xf32>
    %cst_12 = arith.constant dense<0.000000e+00> : vector<8x128xf32>
    %15 = tpu.matmul %14, %5, %cst_12 {dimension_numbers = #tpu.dot_dimension_numbers<[1], [0], [0], [1], [0, 0, 1, 1], [], []>} : vector<8x128xf32>, vector<128x128xf32>, vector<8x128xf32> -> vector<8x128xf32>
    %16 = vector.broadcast %6 : vector<1x128xf32> to vector<8x128xf32>
    %17 = arith.addf %15, %16 : vector<8x128xf32>
    %18 = math.tanh %17 : vector<8x128xf32>
    %cst_13 = arith.constant dense<0.000000e+00> : vector<8x128xf32>
    %19 = tpu.matmul %18, %7, %cst_13 {dimension_numbers = #tpu.dot_dimension_numbers<[1], [0], [0], [1], [0, 0, 1, 1], [], []>} : vector<8x128xf32>, vector<128x128xf32>, vector<8x128xf32> -> vector<8x128xf32>
    %20 = vector.broadcast %8 : vector<1x128xf32> to vector<8x128xf32>
    %21 = arith.addf %19, %20 : vector<8x128xf32>
    %22 = vector.extract_strided_slice %21 {offsets = [0, 0], sizes = [8, 4], strides = [1, 1]} : vector<8x128xf32> to vector<8x4xf32>
    %23 = vector.extract_strided_slice %21 {offsets = [0, 4], sizes = [8, 4], strides = [1, 1]} : vector<8x128xf32> to vector<8x4xf32>
    %24 = vector.extract_strided_slice %21 {offsets = [0, 8], sizes = [8, 16], strides = [1, 1]} : vector<8x128xf32> to vector<8x16xf32>
    %25 = vector.extract_strided_slice %21 {offsets = [0, 24], sizes = [8, 16], strides = [1, 1]} : vector<8x128xf32> to vector<8x16xf32>
    %26 = vector.extract_strided_slice %21 {offsets = [0, 40], sizes = [8, 16], strides = [1, 1]} : vector<8x128xf32> to vector<8x16xf32>
    %27 = vector.extract_strided_slice %21 {offsets = [0, 56], sizes = [8, 16], strides = [1, 1]} : vector<8x128xf32> to vector<8x16xf32>
    %28 = vector.extract_strided_slice %21 {offsets = [0, 72], sizes = [8, 16], strides = [1, 1]} : vector<8x128xf32> to vector<8x16xf32>
    %29 = arith.maximumf %24, %25 : vector<8x16xf32>
    %30 = arith.maximumf %29, %26 : vector<8x16xf32>
    %31 = arith.maximumf %30, %27 : vector<8x16xf32>
    %32 = arith.maximumf %31, %28 : vector<8x16xf32>
    %33 = arith.subf %24, %32 : vector<8x16xf32>
    %34 = math.exp %33 : vector<8x16xf32>
    %35 = arith.subf %25, %32 : vector<8x16xf32>
    %36 = math.exp %35 : vector<8x16xf32>
    %37 = arith.subf %26, %32 : vector<8x16xf32>
    %38 = math.exp %37 : vector<8x16xf32>
    %39 = arith.subf %27, %32 : vector<8x16xf32>
    %40 = math.exp %39 : vector<8x16xf32>
    %41 = arith.subf %28, %32 : vector<8x16xf32>
    %42 = math.exp %41 : vector<8x16xf32>
    %43 = arith.addf %34, %36 : vector<8x16xf32>
    %44 = arith.addf %43, %38 : vector<8x16xf32>
    %45 = arith.addf %44, %40 : vector<8x16xf32>
    %46 = arith.addf %45, %42 : vector<8x16xf32>
    %cst_14 = arith.constant 6.000000e+00 : f32
    %47 = vector.broadcast %cst_14 : f32 to vector<8x16xf32>
    %48 = arith.divf %47, %46 : vector<8x16xf32>
    %49 = arith.mulf %34, %48 : vector<8x16xf32>
    %50 = arith.mulf %36, %48 : vector<8x16xf32>
    %51 = arith.mulf %38, %48 : vector<8x16xf32>
    %52 = arith.mulf %40, %48 : vector<8x16xf32>
    %53 = arith.mulf %42, %48 : vector<8x16xf32>
    %54 = math.exp %49 : vector<8x16xf32>
    %55 = math.exp %50 : vector<8x16xf32>
    %56 = math.exp %51 : vector<8x16xf32>
    %57 = math.exp %52 : vector<8x16xf32>
    %58 = math.exp %53 : vector<8x16xf32>
    %59 = arith.addf %54, %55 : vector<8x16xf32>
    %60 = arith.addf %59, %56 : vector<8x16xf32>
    %61 = arith.addf %60, %57 : vector<8x16xf32>
    %62 = arith.addf %61, %58 : vector<8x16xf32>
    %cst_15 = arith.constant 9.950000e-01 : f32
    %63 = vector.broadcast %cst_15 : f32 to vector<8x16xf32>
    %64 = arith.divf %63, %62 : vector<8x16xf32>
    %65 = arith.mulf %54, %64 : vector<8x16xf32>
    %cst_16 = arith.constant 1.000000e-03 : f32
    %66 = vector.broadcast %cst_16 : f32 to vector<8x16xf32>
    %67 = arith.addf %66, %65 : vector<8x16xf32>
    %68 = arith.mulf %55, %64 : vector<8x16xf32>
    %cst_17 = arith.constant 1.000000e-03 : f32
    %69 = vector.broadcast %cst_17 : f32 to vector<8x16xf32>
    %70 = arith.addf %69, %68 : vector<8x16xf32>
    %71 = arith.mulf %56, %64 : vector<8x16xf32>
    %cst_18 = arith.constant 1.000000e-03 : f32
    %72 = vector.broadcast %cst_18 : f32 to vector<8x16xf32>
    %73 = arith.addf %72, %71 : vector<8x16xf32>
    %74 = arith.mulf %57, %64 : vector<8x16xf32>
    %cst_19 = arith.constant 1.000000e-03 : f32
    %75 = vector.broadcast %cst_19 : f32 to vector<8x16xf32>
    %76 = arith.addf %75, %74 : vector<8x16xf32>
    %cst_20 = arith.constant 6.000000e+00 : f32
    %77 = vector.broadcast %cst_20 : f32 to vector<8x16xf32>
    %78 = arith.mulf %77, %67 : vector<8x16xf32>
    %cst_21 = arith.constant -3.000000e+00 : f32
    %79 = vector.broadcast %cst_21 : f32 to vector<8x16xf32>
    %80 = arith.addf %79, %78 : vector<8x16xf32>
    %81 = arith.addf %67, %70 : vector<8x16xf32>
    %cst_22 = arith.constant 6.000000e+00 : f32
    %82 = vector.broadcast %cst_22 : f32 to vector<8x16xf32>
    %83 = arith.mulf %82, %81 : vector<8x16xf32>
    %cst_23 = arith.constant -3.000000e+00 : f32
    %84 = vector.broadcast %cst_23 : f32 to vector<8x16xf32>
    %85 = arith.addf %84, %83 : vector<8x16xf32>
    %86 = arith.addf %81, %73 : vector<8x16xf32>
    %cst_24 = arith.constant 6.000000e+00 : f32
    %87 = vector.broadcast %cst_24 : f32 to vector<8x16xf32>
    %88 = arith.mulf %87, %86 : vector<8x16xf32>
    %cst_25 = arith.constant -3.000000e+00 : f32
    %89 = vector.broadcast %cst_25 : f32 to vector<8x16xf32>
    %90 = arith.addf %89, %88 : vector<8x16xf32>
    %91 = arith.addf %86, %76 : vector<8x16xf32>
    %cst_26 = arith.constant 6.000000e+00 : f32
    %92 = vector.broadcast %cst_26 : f32 to vector<8x16xf32>
    %93 = arith.mulf %92, %91 : vector<8x16xf32>
    %cst_27 = arith.constant -3.000000e+00 : f32
    %94 = vector.broadcast %cst_27 : f32 to vector<8x16xf32>
    %95 = arith.addf %94, %93 : vector<8x16xf32>
    %96 = vector.extract_strided_slice %21 {offsets = [0, 88], sizes = [8, 32], strides = [1, 1]} : vector<8x128xf32> to vector<8x32xf32>
    %cst_28 = arith.constant 0.000000e+00 : f32
    %97 = vector.broadcast %cst_28 : f32 to vector<8x32xf32>
    %98 = arith.maximumf %96, %97 : vector<8x32xf32>
    %99 = vector.broadcast %cst_28 : f32 to vector<8x32xf32>
    %100 = arith.subf %96, %99 : vector<8x32xf32>
    %101 = arith.cmpf one, %100, %100 : vector<8x32xf32>
    %102 = vector.broadcast %cst_28 : f32 to vector<8x32xf32>
    %103 = arith.addf %96, %102 : vector<8x32xf32>
    %104 = math.absf %100 : vector<8x32xf32>
    %cst_29 = arith.constant 0.000000e+00 : f32
    %105 = vector.broadcast %cst_29 : f32 to vector<8x32xf32>
    %106 = arith.subf %105, %104 : vector<8x32xf32>
    %107 = math.exp %106 : vector<8x32xf32>
    %108 = math.log1p %107 : vector<8x32xf32>
    %109 = arith.addf %98, %108 : vector<8x32xf32>
    %110 = arith.select %101, %103, %109 : vector<8x32xi1>, vector<8x32xf32>
    %cst_30 = arith.constant 0.000000e+00 : f32
    %111 = vector.broadcast %cst_30 : f32 to vector<8x32xf32>
    %112 = arith.maximumf %110, %111 : vector<8x32xf32>
    %113 = vector.broadcast %cst_30 : f32 to vector<8x32xf32>
    %114 = arith.subf %110, %113 : vector<8x32xf32>
    %115 = arith.cmpf one, %114, %114 : vector<8x32xf32>
    %116 = vector.broadcast %cst_30 : f32 to vector<8x32xf32>
    %117 = arith.addf %110, %116 : vector<8x32xf32>
    %118 = math.absf %114 : vector<8x32xf32>
    %cst_31 = arith.constant 0.000000e+00 : f32
    %119 = vector.broadcast %cst_31 : f32 to vector<8x32xf32>
    %120 = arith.subf %119, %118 : vector<8x32xf32>
    %121 = math.exp %120 : vector<8x32xf32>
    %122 = math.log1p %121 : vector<8x32xf32>
    %123 = arith.addf %112, %122 : vector<8x32xf32>
    %124 = arith.select %115, %117, %123 : vector<8x32xi1>, vector<8x32xf32>
    %cst_32 = arith.constant 1.000000e-03 : f32
    %125 = vector.broadcast %cst_32 : f32 to vector<8x32xf32>
    %126 = arith.addf %125, %124 : vector<8x32xf32>
    %cst_33 = arith.constant 0.000000e+00 : f32
    %127 = vector.broadcast %cst_33 : f32 to vector<8x4xf32>
    %128 = vector.extract_strided_slice %80 {offsets = [0, 0], sizes = [8, 4], strides = [1, 1]} : vector<8x16xf32> to vector<8x4xf32>
    %129 = vector.extract_strided_slice %85 {offsets = [0, 0], sizes = [8, 4], strides = [1, 1]} : vector<8x16xf32> to vector<8x4xf32>
    %130 = vector.extract_strided_slice %90 {offsets = [0, 0], sizes = [8, 4], strides = [1, 1]} : vector<8x16xf32> to vector<8x4xf32>
    %131 = vector.extract_strided_slice %95 {offsets = [0, 0], sizes = [8, 4], strides = [1, 1]} : vector<8x16xf32> to vector<8x4xf32>
    %132 = vector.extract_strided_slice %80 {offsets = [0, 8], sizes = [8, 4], strides = [1, 1]} : vector<8x16xf32> to vector<8x4xf32>
    %133 = vector.extract_strided_slice %85 {offsets = [0, 8], sizes = [8, 4], strides = [1, 1]} : vector<8x16xf32> to vector<8x4xf32>
    %134 = vector.extract_strided_slice %90 {offsets = [0, 8], sizes = [8, 4], strides = [1, 1]} : vector<8x16xf32> to vector<8x4xf32>
    %135 = vector.extract_strided_slice %95 {offsets = [0, 8], sizes = [8, 4], strides = [1, 1]} : vector<8x16xf32> to vector<8x4xf32>
    %136 = vector.extract_strided_slice %126 {offsets = [0, 0], sizes = [8, 4], strides = [1, 1]} : vector<8x32xf32> to vector<8x4xf32>
    %137 = vector.extract_strided_slice %126 {offsets = [0, 8], sizes = [8, 4], strides = [1, 1]} : vector<8x32xf32> to vector<8x4xf32>
    %138 = vector.extract_strided_slice %126 {offsets = [0, 16], sizes = [8, 4], strides = [1, 1]} : vector<8x32xf32> to vector<8x4xf32>
    %139 = vector.extract_strided_slice %126 {offsets = [0, 24], sizes = [8, 4], strides = [1, 1]} : vector<8x32xf32> to vector<8x4xf32>
    %cst_34 = arith.constant -3.000000e+00 : f32
    %140 = vector.broadcast %cst_34 : f32 to vector<8x4xf32>
    %141 = arith.cmpf oge, %1, %140 : vector<8x4xf32>
    %cst_35 = arith.constant 3.000000e+00 : f32
    %142 = vector.broadcast %cst_35 : f32 to vector<8x4xf32>
    %143 = arith.cmpf ole, %1, %142 : vector<8x4xf32>
    %144 = arith.andi %141, %143 : vector<8x4xi1>
    %cst_36 = arith.constant -3.000000e+00 : f32
    %cst_37 = arith.constant 3.000000e+00 : f32
    %145 = vector.broadcast %cst_36 : f32 to vector<8x4xf32>
    %146 = arith.maximumf %145, %1 : vector<8x4xf32>
    %147 = vector.broadcast %cst_37 : f32 to vector<8x4xf32>
    %148 = arith.minimumf %147, %146 : vector<8x4xf32>
    %149 = arith.cmpf oge, %148, %128 : vector<8x4xf32>
    %cst_38 = arith.constant 1.000000e+00 : f32
    %cst_39 = arith.constant 0.000000e+00 : f32
    %150 = vector.broadcast %cst_38 : f32 to vector<8x4xf32>
    %151 = vector.broadcast %cst_39 : f32 to vector<8x4xf32>
    %152 = arith.select %149, %150, %151 : vector<8x4xi1>, vector<8x4xf32>
    %153 = arith.cmpf oge, %148, %129 : vector<8x4xf32>
    %cst_40 = arith.constant 1.000000e+00 : f32
    %cst_41 = arith.constant 0.000000e+00 : f32
    %154 = vector.broadcast %cst_40 : f32 to vector<8x4xf32>
    %155 = vector.broadcast %cst_41 : f32 to vector<8x4xf32>
    %156 = arith.select %153, %154, %155 : vector<8x4xi1>, vector<8x4xf32>
    %157 = arith.cmpf oge, %148, %130 : vector<8x4xf32>
    %cst_42 = arith.constant 1.000000e+00 : f32
    %cst_43 = arith.constant 0.000000e+00 : f32
    %158 = vector.broadcast %cst_42 : f32 to vector<8x4xf32>
    %159 = vector.broadcast %cst_43 : f32 to vector<8x4xf32>
    %160 = arith.select %157, %158, %159 : vector<8x4xi1>, vector<8x4xf32>
    %161 = arith.cmpf oge, %148, %131 : vector<8x4xf32>
    %cst_44 = arith.constant 1.000000e+00 : f32
    %cst_45 = arith.constant 0.000000e+00 : f32
    %162 = vector.broadcast %cst_44 : f32 to vector<8x4xf32>
    %163 = vector.broadcast %cst_45 : f32 to vector<8x4xf32>
    %164 = arith.select %161, %162, %163 : vector<8x4xi1>, vector<8x4xf32>
    %cst_46 = arith.constant 1.000000e+00 : f32
    %165 = vector.broadcast %cst_46 : f32 to vector<8x4xf32>
    %166 = arith.subf %165, %152 : vector<8x4xf32>
    %167 = arith.subf %152, %156 : vector<8x4xf32>
    %168 = arith.subf %156, %160 : vector<8x4xf32>
    %169 = arith.subf %160, %164 : vector<8x4xf32>
    %cst_47 = arith.constant -3.000000e+00 : f32
    %170 = vector.broadcast %cst_47 : f32 to vector<8x4xf32>
    %171 = arith.mulf %166, %170 : vector<8x4xf32>
    %172 = arith.mulf %167, %128 : vector<8x4xf32>
    %173 = arith.addf %171, %172 : vector<8x4xf32>
    %174 = arith.mulf %168, %129 : vector<8x4xf32>
    %175 = arith.addf %173, %174 : vector<8x4xf32>
    %176 = arith.mulf %169, %130 : vector<8x4xf32>
    %177 = arith.addf %175, %176 : vector<8x4xf32>
    %178 = arith.mulf %164, %131 : vector<8x4xf32>
    %179 = arith.addf %177, %178 : vector<8x4xf32>
    %cst_48 = arith.constant 3.000000e+00 : f32
    %180 = vector.broadcast %cst_48 : f32 to vector<8x4xf32>
    %181 = arith.mulf %164, %180 : vector<8x4xf32>
    %182 = arith.mulf %166, %128 : vector<8x4xf32>
    %183 = arith.addf %181, %182 : vector<8x4xf32>
    %184 = arith.mulf %167, %129 : vector<8x4xf32>
    %185 = arith.addf %183, %184 : vector<8x4xf32>
    %186 = arith.mulf %168, %130 : vector<8x4xf32>
    %187 = arith.addf %185, %186 : vector<8x4xf32>
    %188 = arith.mulf %169, %131 : vector<8x4xf32>
    %189 = arith.addf %187, %188 : vector<8x4xf32>
    %190 = arith.subf %189, %179 : vector<8x4xf32>
    %cst_49 = arith.constant -3.000000e+00 : f32
    %191 = vector.broadcast %cst_49 : f32 to vector<8x4xf32>
    %192 = arith.mulf %166, %191 : vector<8x4xf32>
    %193 = arith.mulf %167, %132 : vector<8x4xf32>
    %194 = arith.addf %192, %193 : vector<8x4xf32>
    %195 = arith.mulf %168, %133 : vector<8x4xf32>
    %196 = arith.addf %194, %195 : vector<8x4xf32>
    %197 = arith.mulf %169, %134 : vector<8x4xf32>
    %198 = arith.addf %196, %197 : vector<8x4xf32>
    %199 = arith.mulf %164, %135 : vector<8x4xf32>
    %200 = arith.addf %198, %199 : vector<8x4xf32>
    %cst_50 = arith.constant 3.000000e+00 : f32
    %201 = vector.broadcast %cst_50 : f32 to vector<8x4xf32>
    %202 = arith.mulf %164, %201 : vector<8x4xf32>
    %203 = arith.mulf %166, %132 : vector<8x4xf32>
    %204 = arith.addf %202, %203 : vector<8x4xf32>
    %205 = arith.mulf %167, %133 : vector<8x4xf32>
    %206 = arith.addf %204, %205 : vector<8x4xf32>
    %207 = arith.mulf %168, %134 : vector<8x4xf32>
    %208 = arith.addf %206, %207 : vector<8x4xf32>
    %209 = arith.mulf %169, %135 : vector<8x4xf32>
    %210 = arith.addf %208, %209 : vector<8x4xf32>
    %211 = arith.subf %210, %200 : vector<8x4xf32>
    %cst_51 = arith.constant 1.000000e+00 : f32
    %212 = vector.broadcast %cst_51 : f32 to vector<8x4xf32>
    %213 = arith.mulf %166, %212 : vector<8x4xf32>
    %214 = arith.mulf %167, %136 : vector<8x4xf32>
    %215 = arith.addf %213, %214 : vector<8x4xf32>
    %216 = arith.mulf %168, %137 : vector<8x4xf32>
    %217 = arith.addf %215, %216 : vector<8x4xf32>
    %218 = arith.mulf %169, %138 : vector<8x4xf32>
    %219 = arith.addf %217, %218 : vector<8x4xf32>
    %220 = arith.mulf %164, %139 : vector<8x4xf32>
    %221 = arith.addf %219, %220 : vector<8x4xf32>
    %cst_52 = arith.constant 1.000000e+00 : f32
    %222 = vector.broadcast %cst_52 : f32 to vector<8x4xf32>
    %223 = arith.mulf %164, %222 : vector<8x4xf32>
    %224 = arith.mulf %166, %136 : vector<8x4xf32>
    %225 = arith.addf %223, %224 : vector<8x4xf32>
    %226 = arith.mulf %167, %137 : vector<8x4xf32>
    %227 = arith.addf %225, %226 : vector<8x4xf32>
    %228 = arith.mulf %168, %138 : vector<8x4xf32>
    %229 = arith.addf %227, %228 : vector<8x4xf32>
    %230 = arith.mulf %169, %139 : vector<8x4xf32>
    %231 = arith.addf %229, %230 : vector<8x4xf32>
    %cst_53 = arith.constant 1.000000e+00 : f32
    %232 = vector.broadcast %cst_53 : f32 to vector<8x4xf32>
    %233 = arith.divf %232, %190 : vector<8x4xf32>
    %234 = arith.mulf %211, %233 : vector<8x4xf32>
    %235 = arith.subf %148, %179 : vector<8x4xf32>
    %236 = arith.mulf %235, %233 : vector<8x4xf32>
    %cst_54 = arith.constant 1.000000e+00 : f32
    %237 = vector.broadcast %cst_54 : f32 to vector<8x4xf32>
    %238 = arith.subf %237, %236 : vector<8x4xf32>
    %239 = arith.mulf %236, %238 : vector<8x4xf32>
    %240 = arith.mulf %234, %236 : vector<8x4xf32>
    %241 = arith.mulf %240, %236 : vector<8x4xf32>
    %242 = arith.mulf %221, %239 : vector<8x4xf32>
    %243 = arith.addf %241, %242 : vector<8x4xf32>
    %244 = arith.mulf %211, %243 : vector<8x4xf32>
    %245 = arith.addf %221, %231 : vector<8x4xf32>
    %cst_55 = arith.constant 2.000000e+00 : f32
    %246 = vector.broadcast %cst_55 : f32 to vector<8x4xf32>
    %247 = arith.mulf %246, %234 : vector<8x4xf32>
    %248 = arith.subf %245, %247 : vector<8x4xf32>
    %249 = arith.mulf %248, %239 : vector<8x4xf32>
    %250 = arith.addf %234, %249 : vector<8x4xf32>
    %251 = arith.divf %244, %250 : vector<8x4xf32>
    %252 = arith.addf %200, %251 : vector<8x4xf32>
    %253 = arith.mulf %234, %234 : vector<8x4xf32>
    %254 = arith.mulf %231, %236 : vector<8x4xf32>
    %255 = arith.mulf %254, %236 : vector<8x4xf32>
    %cst_56 = arith.constant 2.000000e+00 : f32
    %256 = vector.broadcast %cst_56 : f32 to vector<8x4xf32>
    %257 = arith.mulf %256, %234 : vector<8x4xf32>
    %258 = arith.mulf %257, %239 : vector<8x4xf32>
    %259 = arith.addf %255, %258 : vector<8x4xf32>
    %cst_57 = arith.constant 1.000000e+00 : f32
    %260 = vector.broadcast %cst_57 : f32 to vector<8x4xf32>
    %261 = arith.subf %260, %236 : vector<8x4xf32>
    %262 = arith.mulf %221, %261 : vector<8x4xf32>
    %cst_58 = arith.constant 1.000000e+00 : f32
    %263 = vector.broadcast %cst_58 : f32 to vector<8x4xf32>
    %264 = arith.subf %263, %236 : vector<8x4xf32>
    %265 = arith.mulf %262, %264 : vector<8x4xf32>
    %266 = arith.addf %259, %265 : vector<8x4xf32>
    %267 = arith.mulf %253, %266 : vector<8x4xf32>
    %268 = math.log %267 : vector<8x4xf32>
    %269 = math.log %250 : vector<8x4xf32>
    %cst_59 = arith.constant 2.000000e+00 : f32
    %270 = vector.broadcast %cst_59 : f32 to vector<8x4xf32>
    %271 = arith.mulf %270, %269 : vector<8x4xf32>
    %272 = arith.subf %268, %271 : vector<8x4xf32>
    %273 = arith.select %144, %252, %1 : vector<8x4xi1>, vector<8x4xf32>
    %cst_60 = arith.constant 0.000000e+00 : f32
    %274 = vector.broadcast %cst_60 : f32 to vector<8x4xf32>
    %275 = arith.select %144, %272, %274 : vector<8x4xi1>, vector<8x4xf32>
    %276 = arith.addf %127, %275 : vector<8x4xf32>
    %277 = vector.extract_strided_slice %80 {offsets = [0, 4], sizes = [8, 4], strides = [1, 1]} : vector<8x16xf32> to vector<8x4xf32>
    %278 = vector.extract_strided_slice %85 {offsets = [0, 4], sizes = [8, 4], strides = [1, 1]} : vector<8x16xf32> to vector<8x4xf32>
    %279 = vector.extract_strided_slice %90 {offsets = [0, 4], sizes = [8, 4], strides = [1, 1]} : vector<8x16xf32> to vector<8x4xf32>
    %280 = vector.extract_strided_slice %95 {offsets = [0, 4], sizes = [8, 4], strides = [1, 1]} : vector<8x16xf32> to vector<8x4xf32>
    %281 = vector.extract_strided_slice %80 {offsets = [0, 12], sizes = [8, 4], strides = [1, 1]} : vector<8x16xf32> to vector<8x4xf32>
    %282 = vector.extract_strided_slice %85 {offsets = [0, 12], sizes = [8, 4], strides = [1, 1]} : vector<8x16xf32> to vector<8x4xf32>
    %283 = vector.extract_strided_slice %90 {offsets = [0, 12], sizes = [8, 4], strides = [1, 1]} : vector<8x16xf32> to vector<8x4xf32>
    %284 = vector.extract_strided_slice %95 {offsets = [0, 12], sizes = [8, 4], strides = [1, 1]} : vector<8x16xf32> to vector<8x4xf32>
    %285 = vector.extract_strided_slice %126 {offsets = [0, 4], sizes = [8, 4], strides = [1, 1]} : vector<8x32xf32> to vector<8x4xf32>
    %286 = vector.extract_strided_slice %126 {offsets = [0, 12], sizes = [8, 4], strides = [1, 1]} : vector<8x32xf32> to vector<8x4xf32>
    %287 = vector.extract_strided_slice %126 {offsets = [0, 20], sizes = [8, 4], strides = [1, 1]} : vector<8x32xf32> to vector<8x4xf32>
    %288 = vector.extract_strided_slice %126 {offsets = [0, 28], sizes = [8, 4], strides = [1, 1]} : vector<8x32xf32> to vector<8x4xf32>
    %cst_61 = arith.constant -3.000000e+00 : f32
    %289 = vector.broadcast %cst_61 : f32 to vector<8x4xf32>
    %290 = arith.cmpf oge, %273, %289 : vector<8x4xf32>
    %cst_62 = arith.constant 3.000000e+00 : f32
    %291 = vector.broadcast %cst_62 : f32 to vector<8x4xf32>
    %292 = arith.cmpf ole, %273, %291 : vector<8x4xf32>
    %293 = arith.andi %290, %292 : vector<8x4xi1>
    %cst_63 = arith.constant -3.000000e+00 : f32
    %cst_64 = arith.constant 3.000000e+00 : f32
    %294 = vector.broadcast %cst_63 : f32 to vector<8x4xf32>
    %295 = arith.maximumf %294, %273 : vector<8x4xf32>
    %296 = vector.broadcast %cst_64 : f32 to vector<8x4xf32>
    %297 = arith.minimumf %296, %295 : vector<8x4xf32>
    %298 = arith.cmpf oge, %297, %277 : vector<8x4xf32>
    %cst_65 = arith.constant 1.000000e+00 : f32
    %cst_66 = arith.constant 0.000000e+00 : f32
    %299 = vector.broadcast %cst_65 : f32 to vector<8x4xf32>
    %300 = vector.broadcast %cst_66 : f32 to vector<8x4xf32>
    %301 = arith.select %298, %299, %300 : vector<8x4xi1>, vector<8x4xf32>
    %302 = arith.cmpf oge, %297, %278 : vector<8x4xf32>
    %cst_67 = arith.constant 1.000000e+00 : f32
    %cst_68 = arith.constant 0.000000e+00 : f32
    %303 = vector.broadcast %cst_67 : f32 to vector<8x4xf32>
    %304 = vector.broadcast %cst_68 : f32 to vector<8x4xf32>
    %305 = arith.select %302, %303, %304 : vector<8x4xi1>, vector<8x4xf32>
    %306 = arith.cmpf oge, %297, %279 : vector<8x4xf32>
    %cst_69 = arith.constant 1.000000e+00 : f32
    %cst_70 = arith.constant 0.000000e+00 : f32
    %307 = vector.broadcast %cst_69 : f32 to vector<8x4xf32>
    %308 = vector.broadcast %cst_70 : f32 to vector<8x4xf32>
    %309 = arith.select %306, %307, %308 : vector<8x4xi1>, vector<8x4xf32>
    %310 = arith.cmpf oge, %297, %280 : vector<8x4xf32>
    %cst_71 = arith.constant 1.000000e+00 : f32
    %cst_72 = arith.constant 0.000000e+00 : f32
    %311 = vector.broadcast %cst_71 : f32 to vector<8x4xf32>
    %312 = vector.broadcast %cst_72 : f32 to vector<8x4xf32>
    %313 = arith.select %310, %311, %312 : vector<8x4xi1>, vector<8x4xf32>
    %cst_73 = arith.constant 1.000000e+00 : f32
    %314 = vector.broadcast %cst_73 : f32 to vector<8x4xf32>
    %315 = arith.subf %314, %301 : vector<8x4xf32>
    %316 = arith.subf %301, %305 : vector<8x4xf32>
    %317 = arith.subf %305, %309 : vector<8x4xf32>
    %318 = arith.subf %309, %313 : vector<8x4xf32>
    %cst_74 = arith.constant -3.000000e+00 : f32
    %319 = vector.broadcast %cst_74 : f32 to vector<8x4xf32>
    %320 = arith.mulf %315, %319 : vector<8x4xf32>
    %321 = arith.mulf %316, %277 : vector<8x4xf32>
    %322 = arith.addf %320, %321 : vector<8x4xf32>
    %323 = arith.mulf %317, %278 : vector<8x4xf32>
    %324 = arith.addf %322, %323 : vector<8x4xf32>
    %325 = arith.mulf %318, %279 : vector<8x4xf32>
    %326 = arith.addf %324, %325 : vector<8x4xf32>
    %327 = arith.mulf %313, %280 : vector<8x4xf32>
    %328 = arith.addf %326, %327 : vector<8x4xf32>
    %cst_75 = arith.constant 3.000000e+00 : f32
    %329 = vector.broadcast %cst_75 : f32 to vector<8x4xf32>
    %330 = arith.mulf %313, %329 : vector<8x4xf32>
    %331 = arith.mulf %315, %277 : vector<8x4xf32>
    %332 = arith.addf %330, %331 : vector<8x4xf32>
    %333 = arith.mulf %316, %278 : vector<8x4xf32>
    %334 = arith.addf %332, %333 : vector<8x4xf32>
    %335 = arith.mulf %317, %279 : vector<8x4xf32>
    %336 = arith.addf %334, %335 : vector<8x4xf32>
    %337 = arith.mulf %318, %280 : vector<8x4xf32>
    %338 = arith.addf %336, %337 : vector<8x4xf32>
    %339 = arith.subf %338, %328 : vector<8x4xf32>
    %cst_76 = arith.constant -3.000000e+00 : f32
    %340 = vector.broadcast %cst_76 : f32 to vector<8x4xf32>
    %341 = arith.mulf %315, %340 : vector<8x4xf32>
    %342 = arith.mulf %316, %281 : vector<8x4xf32>
    %343 = arith.addf %341, %342 : vector<8x4xf32>
    %344 = arith.mulf %317, %282 : vector<8x4xf32>
    %345 = arith.addf %343, %344 : vector<8x4xf32>
    %346 = arith.mulf %318, %283 : vector<8x4xf32>
    %347 = arith.addf %345, %346 : vector<8x4xf32>
    %348 = arith.mulf %313, %284 : vector<8x4xf32>
    %349 = arith.addf %347, %348 : vector<8x4xf32>
    %cst_77 = arith.constant 3.000000e+00 : f32
    %350 = vector.broadcast %cst_77 : f32 to vector<8x4xf32>
    %351 = arith.mulf %313, %350 : vector<8x4xf32>
    %352 = arith.mulf %315, %281 : vector<8x4xf32>
    %353 = arith.addf %351, %352 : vector<8x4xf32>
    %354 = arith.mulf %316, %282 : vector<8x4xf32>
    %355 = arith.addf %353, %354 : vector<8x4xf32>
    %356 = arith.mulf %317, %283 : vector<8x4xf32>
    %357 = arith.addf %355, %356 : vector<8x4xf32>
    %358 = arith.mulf %318, %284 : vector<8x4xf32>
    %359 = arith.addf %357, %358 : vector<8x4xf32>
    %360 = arith.subf %359, %349 : vector<8x4xf32>
    %cst_78 = arith.constant 1.000000e+00 : f32
    %361 = vector.broadcast %cst_78 : f32 to vector<8x4xf32>
    %362 = arith.mulf %315, %361 : vector<8x4xf32>
    %363 = arith.mulf %316, %285 : vector<8x4xf32>
    %364 = arith.addf %362, %363 : vector<8x4xf32>
    %365 = arith.mulf %317, %286 : vector<8x4xf32>
    %366 = arith.addf %364, %365 : vector<8x4xf32>
    %367 = arith.mulf %318, %287 : vector<8x4xf32>
    %368 = arith.addf %366, %367 : vector<8x4xf32>
    %369 = arith.mulf %313, %288 : vector<8x4xf32>
    %370 = arith.addf %368, %369 : vector<8x4xf32>
    %cst_79 = arith.constant 1.000000e+00 : f32
    %371 = vector.broadcast %cst_79 : f32 to vector<8x4xf32>
    %372 = arith.mulf %313, %371 : vector<8x4xf32>
    %373 = arith.mulf %315, %285 : vector<8x4xf32>
    %374 = arith.addf %372, %373 : vector<8x4xf32>
    %375 = arith.mulf %316, %286 : vector<8x4xf32>
    %376 = arith.addf %374, %375 : vector<8x4xf32>
    %377 = arith.mulf %317, %287 : vector<8x4xf32>
    %378 = arith.addf %376, %377 : vector<8x4xf32>
    %379 = arith.mulf %318, %288 : vector<8x4xf32>
    %380 = arith.addf %378, %379 : vector<8x4xf32>
    %cst_80 = arith.constant 1.000000e+00 : f32
    %381 = vector.broadcast %cst_80 : f32 to vector<8x4xf32>
    %382 = arith.divf %381, %339 : vector<8x4xf32>
    %383 = arith.mulf %360, %382 : vector<8x4xf32>
    %384 = arith.subf %297, %328 : vector<8x4xf32>
    %385 = arith.mulf %384, %382 : vector<8x4xf32>
    %cst_81 = arith.constant 1.000000e+00 : f32
    %386 = vector.broadcast %cst_81 : f32 to vector<8x4xf32>
    %387 = arith.subf %386, %385 : vector<8x4xf32>
    %388 = arith.mulf %385, %387 : vector<8x4xf32>
    %389 = arith.mulf %383, %385 : vector<8x4xf32>
    %390 = arith.mulf %389, %385 : vector<8x4xf32>
    %391 = arith.mulf %370, %388 : vector<8x4xf32>
    %392 = arith.addf %390, %391 : vector<8x4xf32>
    %393 = arith.mulf %360, %392 : vector<8x4xf32>
    %394 = arith.addf %370, %380 : vector<8x4xf32>
    %cst_82 = arith.constant 2.000000e+00 : f32
    %395 = vector.broadcast %cst_82 : f32 to vector<8x4xf32>
    %396 = arith.mulf %395, %383 : vector<8x4xf32>
    %397 = arith.subf %394, %396 : vector<8x4xf32>
    %398 = arith.mulf %397, %388 : vector<8x4xf32>
    %399 = arith.addf %383, %398 : vector<8x4xf32>
    %400 = arith.divf %393, %399 : vector<8x4xf32>
    %401 = arith.addf %349, %400 : vector<8x4xf32>
    %402 = arith.mulf %383, %383 : vector<8x4xf32>
    %403 = arith.mulf %380, %385 : vector<8x4xf32>
    %404 = arith.mulf %403, %385 : vector<8x4xf32>
    %cst_83 = arith.constant 2.000000e+00 : f32
    %405 = vector.broadcast %cst_83 : f32 to vector<8x4xf32>
    %406 = arith.mulf %405, %383 : vector<8x4xf32>
    %407 = arith.mulf %406, %388 : vector<8x4xf32>
    %408 = arith.addf %404, %407 : vector<8x4xf32>
    %cst_84 = arith.constant 1.000000e+00 : f32
    %409 = vector.broadcast %cst_84 : f32 to vector<8x4xf32>
    %410 = arith.subf %409, %385 : vector<8x4xf32>
    %411 = arith.mulf %370, %410 : vector<8x4xf32>
    %cst_85 = arith.constant 1.000000e+00 : f32
    %412 = vector.broadcast %cst_85 : f32 to vector<8x4xf32>
    %413 = arith.subf %412, %385 : vector<8x4xf32>
    %414 = arith.mulf %411, %413 : vector<8x4xf32>
    %415 = arith.addf %408, %414 : vector<8x4xf32>
    %416 = arith.mulf %402, %415 : vector<8x4xf32>
    %417 = math.log %416 : vector<8x4xf32>
    %418 = math.log %399 : vector<8x4xf32>
    %cst_86 = arith.constant 2.000000e+00 : f32
    %419 = vector.broadcast %cst_86 : f32 to vector<8x4xf32>
    %420 = arith.mulf %419, %418 : vector<8x4xf32>
    %421 = arith.subf %417, %420 : vector<8x4xf32>
    %422 = arith.select %293, %401, %273 : vector<8x4xi1>, vector<8x4xf32>
    %cst_87 = arith.constant 0.000000e+00 : f32
    %423 = vector.broadcast %cst_87 : f32 to vector<8x4xf32>
    %424 = arith.select %293, %421, %423 : vector<8x4xi1>, vector<8x4xf32>
    %425 = arith.addf %276, %424 : vector<8x4xf32>
    %cst_88 = arith.constant 0.000000e+00 : f32
    %426 = vector.broadcast %cst_88 : f32 to vector<8x4xf32>
    %427 = arith.subf %426, %23 : vector<8x4xf32>
    %428 = math.exp %427 : vector<8x4xf32>
    %429 = arith.subf %22, %422 : vector<8x4xf32>
    %430 = arith.mulf %429, %428 : vector<8x4xf32>
    %431 = math.exp %430 : vector<8x4xf32>
    %432 = arith.subf %430, %431 : vector<8x4xf32>
    %433 = arith.subf %432, %23 : vector<8x4xf32>
    %434 = arith.cmpf one, %433, %433 : vector<8x4xf32>
    %435 = math.absf %433 : vector<8x4xf32>
    %cst_89 = arith.constant 0x7F800000 : f32
    %436 = vector.broadcast %cst_89 : f32 to vector<8x4xf32>
    %437 = arith.cmpf oeq, %435, %436 : vector<8x4xf32>
    %438 = arith.ori %434, %437 : vector<8x4xi1>
    %cst_90 = arith.constant -1.000000e+02 : f32
    %439 = vector.broadcast %cst_90 : f32 to vector<8x4xf32>
    %440 = arith.select %438, %439, %433 : vector<8x4xi1>, vector<8x4xf32>
    %441 = arith.addf %425, %440 : vector<8x4xf32>
    %cst_91 = arith.constant dense<0.000000e+00> : vector<8xf32>
    %442 = vector.multi_reduction <add>, %441, %cst_91 [1] : vector<8x4xf32> to vector<8xf32>
    %443 = vector.shape_cast %442 : vector<8xf32> to vector<8x1xf32>
    %c0_92 = arith.constant 0 : index
    %c0_93 = arith.constant 0 : index
    %444 = vector.load %arg3[%c0_92, %c0_93] : memref<8x1xf32, #tpu.memory_space<vmem>>, vector<8x1xf32>
    tpu.vector_store %arg3[%c0_92, %c0_93], %443 {strides = array<i32>} : memref<8x1xf32, #tpu.memory_space<vmem>>, vector<8x1xf32>,
    return
  }
}

</mosaic_0001>

<llo_original>
// kernel: tpu_custom_call.1
$region0: #{tpu_custom_call.1}
  #allocation0 [shape = 'u32[]', space=smem, size = 0x4, offset = 0x4, fixed_abs, tag = 'smem constant byte address 0x4 - core index']
  #allocation1 [shape = 'u32[72,128]{1,0:T(1,128)}', space=vmem, size = 0x9000, scoped, tag = 'internal scratch']
  %s0 = inlined_call_operand.vmem [shape: f32[8,3], index: 0, kind: input, shape index: {}]
  %s1 = inlined_call_operand.vmem [shape: f32[8,4], index: 1, kind: input, shape index: {}]
  %s2 = inlined_call_operand.hbm [shape: f32[280,128], index: 2, kind: input, shape index: {}]
  %s3 = inlined_call_operand.vmem [shape: f32[8,1], index: 3, kind: output, shape index: {}]
  %s4 = sld [smem:[#allocation0]]
  $region26: #{tpu_custom_call.1} parent=0
    _
  %s6 = ssub.s32 1, %s4
  %s7 = scalar_select 0, %s6, %s4
  $region1: #{tpu_custom_call.1} parent=0
    #allocation2 [shape = 'u8[143360]{0}', space=vmem, size = 0x23000, scoped, tag = 'input window, operand 2, single buffered']
    #allocation3 [shape = 's32[1]{0}', space=sflag, size = 0x4, scoped, tag = 'scoped memory for tpu_custom_call.1']
    %8 = vsyncpa [#allocation3], 0
    // Predicated region
    $region2: #{tpu_custom_call.1} parent=1 // pred_check
      _
    $region3: #{tpu_custom_call.1} parent=1 // pred_check_branch
      %10 = sbr.rel (0) target = $region5
    $region4: #{tpu_custom_call.1} parent=1 // pred_region
      _
    $region5: #{tpu_custom_call.1} parent=1 // pred_fallthru
      _
    // Predicated region
    $region6: #{tpu_custom_call.1} parent=1 // pred_check
      _
    $region7: #{tpu_custom_call.1} parent=1 // pred_check_branch
      %12 = sbr.rel (0) target = $region9
    $region8: #{tpu_custom_call.1} parent=1 // pred_region
      _
    $region9: #{tpu_custom_call.1} parent=1 // pred_fallthru
      _
    // Predicated region
    $region10: #{tpu_custom_call.1} parent=1 // pred_check
      _
    $region11: #{tpu_custom_call.1} parent=1 // pred_check_branch
      %14 = sbr.rel (0) target = $region13
    $region12: #{tpu_custom_call.1} parent=1 // pred_region
      %16 = vsyncadd [#allocation3], 0
      %s17 = sshll.u32 %s2, 4
      %s18 = int_to_ptr.hbm [resolvable:$true] %s17
      %s19 = sshll.u32 [#allocation2], 4
      %s20 = int_to_ptr.vmem [resolvable:$true] %s19
      %25 = dma.hbm_to_vmem [thread:$0]  %s18, 4480, %s20, [#allocation3], 128, 128, 8
    $region13: #{tpu_custom_call.1} parent=1 // pred_fallthru
      _
    // Predicated region
    $region14: #{tpu_custom_call.1} parent=1 // pred_check
      _
    $region15: #{tpu_custom_call.1} parent=1 // pred_check_branch
      %27 = sbr.rel (0) target = $region17
    $region16: #{tpu_custom_call.1} parent=1 // pred_region
      %29 = dma.done [#allocation3], 4480
    $region17: #{tpu_custom_call.1} parent=1 // pred_fallthru
      _
    %v30 = vld [vmem:[%s0] sm:$0xff]
    %v31 = vld [vmem:[%s1] sm:$0xff]
    %v32 = vld [vmem:[#allocation2] sm:$0x7]
    %v33 = vld [vmem:[#allocation2 + $0x3] sm:$0xf]
    %v34 = vld [vmem:[#allocation2 + $0x7] sm:$0x1]
    %v35 = vld [vmem:[#allocation2 + $0x8] sm:$0xff]
    %v36 = vld [vmem:[#allocation2 + $0x10] sm:$0xff]
    %v37 = vld [vmem:[#allocation2 + $0x18] sm:$0xff]
    %v38 = vld [vmem:[#allocation2 + $0x20] sm:$0xff]
    %v39 = vld [vmem:[#allocation2 + $0x28] sm:$0xff]
    %v40 = vld [vmem:[#allocation2 + $0x30] sm:$0xff]
    %v41 = vld [vmem:[#allocation2 + $0x38] sm:$0xff]
    %v42 = vld [vmem:[#allocation2 + $0x40] sm:$0xff]
    %v43 = vld [vmem:[#allocation2 + $0x48] sm:$0xff]
    %v44 = vld [vmem:[#allocation2 + $0x50] sm:$0xff]
    %v45 = vld [vmem:[#allocation2 + $0x58] sm:$0xff]
    %v46 = vld [vmem:[#allocation2 + $0x60] sm:$0xff]
    %v47 = vld [vmem:[#allocation2 + $0x68] sm:$0xff]
    %v48 = vld [vmem:[#allocation2 + $0x70] sm:$0xff]
    %v49 = vld [vmem:[#allocation2 + $0x78] sm:$0xff]
    %v50 = vld [vmem:[#allocation2 + $0x80] sm:$0xff]
    %v51 = vld [vmem:[#allocation2 + $0x88] sm:$0x1]
    %v52 = vld [vmem:[#allocation2 + $0x90] sm:$0xff]
    %v53 = vld [vmem:[#allocation2 + $0x98] sm:$0xff]
    %v54 = vld [vmem:[#allocation2 + $0xa0] sm:$0xff]
    %v55 = vld [vmem:[#allocation2 + $0xa8] sm:$0xff]
    %v56 = vld [vmem:[#allocation2 + $0xb0] sm:$0xff]
    %v57 = vld [vmem:[#allocation2 + $0xb8] sm:$0xff]
    %v58 = vld [vmem:[#allocation2 + $0xc0] sm:$0xff]
    %v59 = vld [vmem:[#allocation2 + $0xc8] sm:$0xff]
    %v60 = vld [vmem:[#allocation2 + $0xd0] sm:$0xff]
    %v61 = vld [vmem:[#allocation2 + $0xd8] sm:$0xff]
    %v62 = vld [vmem:[#allocation2 + $0xe0] sm:$0xff]
    %v63 = vld [vmem:[#allocation2 + $0xe8] sm:$0xff]
    %v64 = vld [vmem:[#allocation2 + $0xf0] sm:$0xff]
    %v65 = vld [vmem:[#allocation2 + $0xf8] sm:$0xff]
    %v66 = vld [vmem:[#allocation2 + $0x100] sm:$0xff]
    %v67 = vld [vmem:[#allocation2 + $0x108] sm:$0xff]
    %v68 = vld [vmem:[#allocation2 + $0x110] sm:$0x1]
    %vm69 = vcmask 31744
    %v71 = vsel %vm69, %v31, 0
    %vm73 = vcmask 1043456
    %v75 = vsel %vm73, %v33, 0
    %77 = vmatpush.msra.mxu0 0.0
    %78 = vmatpush.msra.mxu0 0.0
    %79 = vmatpush.msra.mxu0 0.0
    %80 = vmatpush.msra.mxu0 0.0
    %81 = vmatpush.msra.mxu0 0.0
    %82 = vmatpush.msra.mxu0 0.0
    %83 = vmatpush.msra.mxu0 0.0
    %84 = vmatpush.msra.mxu0 0.0
    %85 = vmatpush.msra.mxu0 0.0
    %86 = vmatpush.msra.mxu0 0.0
    %87 = vmatpush.msra.mxu0 0.0
    %88 = vmatpush.msra.mxu0 0.0
    %89 = vmatpush.msra.mxu0 0.0
    %90 = vmatpush.msra.mxu0 0.0
    %91 = vmatpush.msra.mxu0 0.0
    %92 = vmatpush.msra.mxu0 %v75
    %93 = vmatmul.f32.gmra.mxu0 %v71
    %v94 = vpop.f32.mrf.mxu0
    %v95 = vadd.f32 0.0, %v94
    %96 = vdwg.mxu0
    %vm97 = vcmask 23552
    %v99 = vsel %vm97, %v30, 0
    %vm101 = vcmask 1042432
    %v103 = vsel %vm101, %v32, 0
    %105 = vmatpush.msra.mxu0 0.0
    %106 = vmatpush.msra.mxu0 0.0
    %107 = vmatpush.msra.mxu0 0.0
    %108 = vmatpush.msra.mxu0 0.0
    %109 = vmatpush.msra.mxu0 0.0
    %110 = vmatpush.msra.mxu0 0.0
    %111 = vmatpush.msra.mxu0 0.0
    %112 = vmatpush.msra.mxu0 0.0
    %113 = vmatpush.msra.mxu0 0.0
    %114 = vmatpush.msra.mxu0 0.0
    %115 = vmatpush.msra.mxu0 0.0
    %116 = vmatpush.msra.mxu0 0.0
    %117 = vmatpush.msra.mxu0 0.0
    %118 = vmatpush.msra.mxu0 0.0
    %119 = vmatpush.msra.mxu0 0.0
    %120 = vmatpush.msra.mxu0 %v103
    %121 = vmatmul.f32.gmra.mxu0 %v99
    %v122 = vpop.f32.mrf.mxu0
    %v123 = vadd.f32 %v95, %v122
    %124 = vdwg.mxu0
    %v125 = vperm.slane %v34, 0
    %v126 = vadd.f32 %v123, %v125
    %v127 = vtanh.pop %v126
    %v128 = vperm.slane %v51, 0
    %129 = vmatpush.msra.mxu0 %v50
    %130 = vmatpush.msra.mxu0 %v49
    %131 = vmatpush.msra.mxu0 %v48
    %132 = vmatpush.msra.mxu0 %v47
    %133 = vmatpush.msra.mxu0 %v46
    %134 = vmatpush.msra.mxu0 %v45
    %135 = vmatpush.msra.mxu0 %v44
    %136 = vmatpush.msra.mxu0 %v43
    %137 = vmatpush.msra.mxu0 %v42
    %138 = vmatpush.msra.mxu0 %v41
    %139 = vmatpush.msra.mxu0 %v40
    %140 = vmatpush.msra.mxu0 %v39
    %141 = vmatpush.msra.mxu0 %v38
    %142 = vmatpush.msra.mxu0 %v37
    %143 = vmatpush.msra.mxu0 %v36
    %144 = vmatpush.msra.mxu0 %v35
    %145 = vmatmul.f32.gmra.mxu0 %v127
    %v146 = vpop.f32.mrf.mxu0
    %v147 = vadd.f32 %v128, %v146
    %148 = vdwg.mxu0
    %v149 = vtanh.pop %v147
    %v150 = vperm.slane %v68, 0
    %151 = vmatpush.msra.mxu0 %v67
    %152 = vmatpush.msra.mxu0 %v66
    %153 = vmatpush.msra.mxu0 %v65
    %154 = vmatpush.msra.mxu0 %v64
    %155 = vmatpush.msra.mxu0 %v63
    %156 = vmatpush.msra.mxu0 %v62
    %157 = vmatpush.msra.mxu0 %v61
    %158 = vmatpush.msra.mxu0 %v60
    %159 = vmatpush.msra.mxu0 %v59
    %160 = vmatpush.msra.mxu0 %v58
    %161 = vmatpush.msra.mxu0 %v57
    %162 = vmatpush.msra.mxu0 %v56
    %163 = vmatpush.msra.mxu0 %v55
    %164 = vmatpush.msra.mxu0 %v54
    %165 = vmatpush.msra.mxu0 %v53
    %166 = vmatpush.msra.mxu0 %v52
    %167 = vmatmul.f32.gmra.mxu0 %v149
    %v168 = vpop.f32.mrf.mxu0
    %v169 = vadd.f32 %v150, %v168
    %170 = vdwg.mxu0
    %172 = vrot.lane.b32.xlu0 %v169, 112
    %v173 = vpop.permute.xlu0 %172
    %v175 = vmax.f32 %v169, %v173
    %176 = vrot.lane.b32.xlu0 %v169, 96
    %v177 = vpop.permute.xlu0 %176
    %v179 = vmax.f32 %v175, %v177
    %180 = vrot.lane.b32.xlu0 %v169, 80
    %v181 = vpop.permute.xlu0 %180
    %v183 = vmax.f32 %v179, %v181
    %184 = vrot.lane.b32.xlu0 %v169, 64
    %v185 = vpop.permute.xlu0 %184
    %v187 = vmax.f32 %v183, %v185
    %v188 = vsub.f32 %v169, %v187
    %v189 = vmul.f32 %v188, 1.442695
    %v190 = vpow.pop %v189
    %192 = vrot.lane.b32.xlu0 %v187, 16
    %v193 = vpop.permute.xlu0 %192
    %v195 = vsub.f32 %v169, %v193
    %v196 = vmul.f32 %v195, 1.442695
    %v197 = vpow.pop %v196
    %198 = vrot.lane.b32.xlu0 %v187, 32
    %v199 = vpop.permute.xlu0 %198
    %v201 = vsub.f32 %v169, %v199
    %v202 = vmul.f32 %v201, 1.442695
    %v203 = vpow.pop %v202
    %204 = vrot.lane.b32.xlu0 %v187, 48
    %v205 = vpop.permute.xlu0 %204
    %v207 = vsub.f32 %v169, %v205
    %v208 = vmul.f32 %v207, 1.442695
    %v209 = vpow.pop %v208
    %210 = vrot.lane.b32.xlu0 %v187, 64
    %v211 = vpop.permute.xlu0 %210
    %v213 = vsub.f32 %v169, %v211
    %v214 = vmul.f32 %v213, 1.442695
    %v215 = vpow.pop %v214
    %217 = vrot.lane.b32.xlu0 %v197, 112
    %v218 = vpop.permute.xlu0 %217
    %v220 = vadd.f32 %v190, %v218
    %222 = vrot.lane.b32.xlu0 %v203, 96
    %v223 = vpop.permute.xlu0 %222
    %v225 = vadd.f32 %v220, %v223
    %227 = vrot.lane.b32.xlu0 %v209, 80
    %v228 = vpop.permute.xlu0 %227
    %v230 = vadd.f32 %v225, %v228
    %232 = vrot.lane.b32.xlu0 %v215, 64
    %v233 = vpop.permute.xlu0 %232
    %v235 = vadd.f32 %v230, %v233
    %v236 = vrcp.pop %v235
    %v237 = vmul.f32 %v235, %v236
    %v238 = vsub.f32 1.0, %v237
    %v239 = vmul.f32 %v236, %v238
    %v240 = vadd.f32 %v236, %v239
    %vm241 = vweird.f32 %v235
    %vm242 = vweird.f32 %v236
    %vm243 = vmor %vm241, %vm242
    %v244 = vsel %vm243, %v236, %v240
    %v245 = vand.u32 2147483647, %v235
    %vm246 = vcmp.eq.f32.partialorder %v245, 8.507059e+37
    %v247 = vand.u32 %v235, 2147483648
    %v248 = vor.u32 1.1754944e-38, %v247
    %v249 = vsel %vm246, %v248, %v244
    %v250 = vmul.f32 6.0, %v249
    %v251 = vmul.f32 %v190, %v250
    %253 = vrot.lane.b32.xlu0 %v250, 16
    %v254 = vpop.permute.xlu0 %253
    %v256 = vmul.f32 %v197, %v254
    %257 = vrot.lane.b32.xlu0 %v250, 32
    %v258 = vpop.permute.xlu0 %257
    %v260 = vmul.f32 %v203, %v258
    %261 = vrot.lane.b32.xlu0 %v250, 48
    %v262 = vpop.permute.xlu0 %261
    %v264 = vmul.f32 %v209, %v262
    %265 = vrot.lane.b32.xlu0 %v250, 64
    %v266 = vpop.permute.xlu0 %265
    %v268 = vmul.f32 %v215, %v266
    %v269 = vmul.f32 %v251, 1.442695
    %v270 = vpow.pop %v269
    %v271 = vmul.f32 %v256, 1.442695
    %v272 = vpow.pop %v271
    %v273 = vmul.f32 %v260, 1.442695
    %v274 = vpow.pop %v273
    %v275 = vmul.f32 %v264, 1.442695
    %v276 = vpow.pop %v275
    %v277 = vmul.f32 %v268, 1.442695
    %v278 = vpow.pop %v277
    %280 = vrot.lane.b32.xlu0 %v272, 112
    %v281 = vpop.permute.xlu0 %280
    %v283 = vadd.f32 %v270, %v281
    %285 = vrot.lane.b32.xlu0 %v274, 96
    %v286 = vpop.permute.xlu0 %285
    %v288 = vadd.f32 %v283, %v286
    %290 = vrot.lane.b32.xlu0 %v276, 80
    %v291 = vpop.permute.xlu0 %290
    %v293 = vadd.f32 %v288, %v291
    %295 = vrot.lane.b32.xlu0 %v278, 64
    %v296 = vpop.permute.xlu0 %295
    %v298 = vadd.f32 %v293, %v296
    %v299 = vrcp.pop %v298
    %v300 = vmul.f32 %v298, %v299
    %v301 = vsub.f32 1.0, %v300
    %v302 = vmul.f32 %v299, %v301
    %v303 = vadd.f32 %v299, %v302
    %vm304 = vweird.f32 %v298
    %vm305 = vweird.f32 %v299
    %vm306 = vmor %vm304, %vm305
    %v307 = vsel %vm306, %v299, %v303
    %v308 = vand.u32 2147483647, %v298
    %vm309 = vcmp.eq.f32.partialorder %v308, 8.507059e+37
    %v310 = vand.u32 %v298, 2147483648
    %v311 = vor.u32 1.1754944e-38, %v310
    %v312 = vsel %vm309, %v311, %v307
    %v313 = vmul.f32 0.995, %v312
    %v314 = vmul.f32 %v270, %v313
    %v315 = vadd.f32 %v314, 0.001
    %317 = vrot.lane.b32.xlu0 %v313, 16
    %v318 = vpop.permute.xlu0 %317
    %v320 = vmul.f32 %v272, %v318
    %v321 = vadd.f32 %v320, 0.001
    %322 = vrot.lane.b32.xlu0 %v313, 32
    %v323 = vpop.permute.xlu0 %322
    %v325 = vmul.f32 %v274, %v323
    %v326 = vadd.f32 %v325, 0.001
    %327 = vrot.lane.b32.xlu0 %v313, 48
    %v328 = vpop.permute.xlu0 %327
    %v330 = vmul.f32 %v276, %v328
    %v331 = vadd.f32 %v330, 0.001
    %v332 = vmul.f32 %v315, 6.0
    %v333 = vadd.f32 %v332, -3.0
    %335 = vrot.lane.b32.xlu0 %v321, 112
    %v336 = vpop.permute.xlu0 %335
    %v338 = vadd.f32 %v315, %v336
    %v339 = vmul.f32 %v338, 6.0
    %v340 = vadd.f32 %v339, -3.0
    %342 = vrot.lane.b32.xlu0 %v326, 96
    %v343 = vpop.permute.xlu0 %342
    %v345 = vadd.f32 %v338, %v343
    %v346 = vmul.f32 %v345, 6.0
    %v347 = vadd.f32 %v346, -3.0
    %349 = vrot.lane.b32.xlu0 %v331, 80
    %v350 = vpop.permute.xlu0 %349
    %v352 = vadd.f32 %v345, %v350
    %v353 = vmul.f32 %v352, 6.0
    %v354 = vadd.f32 %v353, -3.0
    %v355 = vmax.f32 %v169, 0.0
    %vm356 = vcmp.ne.f32.partialorder %v169, %v169
    %v357 = vadd.f32 %v169, 0.0
    %v358 = vand.u32 2147483647, %v169
    %v359 = vsub.f32 0.0, %v358
    %v360 = vmul.f32 %v359, 1.442695
    %v361 = vpow.pop %v360
    %v362 = vadd.f32 %v361, 1.0
    %v363 = vlog2.pop %v362
    %v364 = vmul.f32 %v363, 0.6931472
    %v365 = vmul.f32 -0.5, %v361
    %v366 = vadd.f32 %v365, 1.0
    %v367 = vmul.f32 %v366, %v361
    %v368 = vand.u32 2147483647, %v361
    %vm369 = vcmp.lt.f32.partialorder %v368, 0.0004427343
    %v370 = vsel %vm369, %v367, %v364
    %v371 = vadd.f32 %v355, %v370
    %v372 = vsel %vm356, %v357, %v371
    %v373 = vmax.f32 %v372, 0.0
    %vm374 = vcmp.ne.f32.partialorder %v372, %v372
    %v375 = vadd.f32 %v372, 0.0
    %v376 = vand.u32 2147483647, %v372
    %v377 = vsub.f32 0.0, %v376
    %v378 = vmul.f32 %v377, 1.442695
    %v379 = vpow.pop %v378
    %v380 = vadd.f32 %v379, 1.0
    %v381 = vlog2.pop %v380
    %v382 = vmul.f32 %v381, 0.6931472
    %v383 = vmul.f32 -0.5, %v379
    %v384 = vadd.f32 %v383, 1.0
    %v385 = vmul.f32 %v384, %v379
    %v386 = vand.u32 2147483647, %v379
    %vm387 = vcmp.lt.f32.partialorder %v386, 0.0004427343
    %v388 = vsel %vm387, %v385, %v382
    %v389 = vadd.f32 %v373, %v388
    %v390 = vsel %vm374, %v375, %v389
    %v391 = vadd.f32 %v390, 0.001
    %vm392 = vcmp.ge.f32.partialorder %v31, -3.0
    %vm393 = vcmp.le.f32.partialorder %v31, 3.0
    %vm394 = vmand %vm392, %vm393
    %v395 = vmax.f32 %v31, -3.0
    %v396 = vmin.f32 %v395, 3.0
    %398 = vrot.lane.b32.xlu0 %v333, 120
    %v399 = vpop.permute.xlu0 %398
    %vm401 = vcmp.ge.f32.partialorder %v396, %v399
    %v402 = vsel %vm401, 1.0, 0.0
    %404 = vrot.lane.b32.xlu0 %v340, 120
    %v405 = vpop.permute.xlu0 %404
    %vm407 = vcmp.ge.f32.partialorder %v396, %v405
    %v408 = vsel %vm407, 1.0, 0.0
    %410 = vrot.lane.b32.xlu0 %v347, 120
    %v411 = vpop.permute.xlu0 %410
    %vm413 = vcmp.ge.f32.partialorder %v396, %v411
    %v414 = vsel %vm413, 1.0, 0.0
    %416 = vrot.lane.b32.xlu0 %v354, 120
    %v417 = vpop.permute.xlu0 %416
    %vm419 = vcmp.ge.f32.partialorder %v396, %v417
    %v420 = vsel %vm419, 1.0, 0.0
    %v421 = vsub.f32 1.0, %v402
    %v422 = vsub.f32 %v402, %v408
    %v423 = vsub.f32 %v408, %v414
    %v424 = vsub.f32 %v414, %v420
    %v425 = vmul.f32 %v421, -3.0
    %v426 = vmul.f32 %v422, %v399
    %v427 = vadd.f32 %v425, %v426
    %v428 = vmul.f32 %v423, %v405
    %v429 = vadd.f32 %v427, %v428
    %v430 = vmul.f32 %v424, %v411
    %v431 = vadd.f32 %v429, %v430
    %v432 = vmul.f32 %v420, %v417
    %v433 = vadd.f32 %v431, %v432
    %v434 = vmul.f32 %v420, 3.0
    %v435 = vmul.f32 %v421, %v399
    %v436 = vadd.f32 %v434, %v435
    %v437 = vmul.f32 %v422, %v405
    %v438 = vadd.f32 %v436, %v437
    %v439 = vmul.f32 %v423, %v411
    %v440 = vadd.f32 %v438, %v439
    %v441 = vmul.f32 %v424, %v417
    %v442 = vadd.f32 %v440, %v441
    %v443 = vsub.f32 %v442, %v433
    %444 = vrot.lane.b32.xlu0 %v333, 112
    %v445 = vpop.permute.xlu0 %444
    %v447 = vmul.f32 %v422, %v445
    %v448 = vadd.f32 %v425, %v447
    %449 = vrot.lane.b32.xlu0 %v340, 112
    %v450 = vpop.permute.xlu0 %449
    %v452 = vmul.f32 %v423, %v450
    %v453 = vadd.f32 %v448, %v452
    %454 = vrot.lane.b32.xlu0 %v347, 112
    %v455 = vpop.permute.xlu0 %454
    %v457 = vmul.f32 %v424, %v455
    %v458 = vadd.f32 %v453, %v457
    %459 = vrot.lane.b32.xlu0 %v354, 112
    %v460 = vpop.permute.xlu0 %459
    %v462 = vmul.f32 %v420, %v460
    %v463 = vadd.f32 %v458, %v462
    %v464 = vmul.f32 %v421, %v445
    %v465 = vadd.f32 %v434, %v464
    %v466 = vmul.f32 %v422, %v450
    %v467 = vadd.f32 %v465, %v466
    %v468 = vmul.f32 %v423, %v455
    %v469 = vadd.f32 %v467, %v468
    %v470 = vmul.f32 %v424, %v460
    %v471 = vadd.f32 %v469, %v470
    %v472 = vsub.f32 %v471, %v463
    %474 = vrot.lane.b32.xlu0 %v391, 40
    %v475 = vpop.permute.xlu0 %474
    %v477 = vmul.f32 %v422, %v475
    %v478 = vadd.f32 %v421, %v477
    %479 = vrot.lane.b32.xlu0 %v391, 32
    %v480 = vpop.permute.xlu0 %479
    %v482 = vmul.f32 %v423, %v480
    %v483 = vadd.f32 %v478, %v482
    %484 = vrot.lane.b32.xlu0 %v391, 24
    %v485 = vpop.permute.xlu0 %484
    %v487 = vmul.f32 %v424, %v485
    %v488 = vadd.f32 %v483, %v487
    %489 = vrot.lane.b32.xlu0 %v391, 16
    %v490 = vpop.permute.xlu0 %489
    %v492 = vmul.f32 %v420, %v490
    %v493 = vadd.f32 %v488, %v492
    %v494 = vmul.f32 %v421, %v475
    %v495 = vadd.f32 %v420, %v494
    %v496 = vmul.f32 %v422, %v480
    %v497 = vadd.f32 %v495, %v496
    %v498 = vmul.f32 %v423, %v485
    %v499 = vadd.f32 %v497, %v498
    %v500 = vmul.f32 %v424, %v490
    %v501 = vadd.f32 %v499, %v500
    %v502 = vrcp.pop %v443
    %v503 = vmul.f32 %v443, %v502
    %v504 = vsub.f32 1.0, %v503
    %v505 = vmul.f32 %v502, %v504
    %v506 = vadd.f32 %v502, %v505
    %vm507 = vweird.f32 %v443
    %vm508 = vweird.f32 %v502
    %vm509 = vmor %vm507, %vm508
    %v510 = vsel %vm509, %v502, %v506
    %v511 = vand.u32 2147483647, %v443
    %vm512 = vcmp.eq.f32.partialorder %v511, 8.507059e+37
    %v513 = vand.u32 %v443, 2147483648
    %v514 = vor.u32 1.1754944e-38, %v513
    %v515 = vsel %vm512, %v514, %v510
    %v516 = vmul.f32 1.0, %v515
    %v517 = vmul.f32 %v472, %v516
    %v518 = vsub.f32 %v396, %v433
    %v519 = vmul.f32 %v518, %v516
    %v520 = vsub.f32 1.0, %v519
    %v521 = vmul.f32 %v519, %v520
    %v522 = vmul.f32 %v517, %v519
    %v523 = vmul.f32 %v522, %v519
    %v524 = vmul.f32 %v493, %v521
    %v525 = vadd.f32 %v523, %v524
    %v526 = vmul.f32 %v472, %v525
    %v527 = vadd.f32 %v493, %v501
    %v528 = vmul.f32 %v517, 2.0
    %v529 = vsub.f32 %v527, %v528
    %v530 = vmul.f32 %v529, %v521
    %v531 = vadd.f32 %v517, %v530
    %v532 = vrcp.pop %v531
    %v533 = vmul.f32 %v531, %v532
    %v534 = vsub.f32 1.0, %v533
    %v535 = vmul.f32 %v532, %v534
    %v536 = vadd.f32 %v532, %v535
    %vm537 = vweird.f32 %v531
    %vm538 = vweird.f32 %v532
    %vm539 = vmor %vm537, %vm538
    %v540 = vsel %vm539, %v532, %v536
    %v541 = vand.u32 2147483647, %v531
    %vm542 = vcmp.eq.f32.partialorder %v541, 8.507059e+37
    %v543 = vand.u32 %v531, 2147483648
    %v544 = vor.u32 1.1754944e-38, %v543
    %v545 = vsel %vm542, %v544, %v540
    %v546 = vmul.f32 %v526, %v545
    %v547 = vadd.f32 %v463, %v546
    %v548 = vmul.f32 %v517, %v517
    %v549 = vmul.f32 %v501, %v519
    %v550 = vmul.f32 %v549, %v519
    %v551 = vmul.f32 %v528, %v521
    %v552 = vadd.f32 %v550, %v551
    %v553 = vmul.f32 %v493, %v520
    %v554 = vmul.f32 %v553, %v520
    %v555 = vadd.f32 %v552, %v554
    %v556 = vmul.f32 %v548, %v555
    %v557 = vlog2.pop %v556
    %v558 = vmul.f32 %v557, 0.6931472
    %v559 = vlog2.pop %v531
    %v560 = vmul.f32 %v559, 0.6931472
    %v561 = vmul.f32 %v560, 2.0
    %v562 = vsub.f32 %v558, %v561
    %v563 = vsel %vm394, %v547, %v31
    %v564 = vsel %vm394, %v562, 0.0
    %v565 = vadd.f32 %v564, 0.0
    %vm566 = vcmp.ge.f32.partialorder %v563, -3.0
    %vm567 = vcmp.le.f32.partialorder %v563, 3.0
    %vm568 = vmand %vm566, %vm567
    %v569 = vmax.f32 %v563, -3.0
    %v570 = vmin.f32 %v569, 3.0
    %571 = vrot.lane.b32.xlu0 %v333, 116
    %v572 = vpop.permute.xlu0 %571
    %vm574 = vcmp.ge.f32.partialorder %v570, %v572
    %v575 = vsel %vm574, 1.0, 0.0
    %576 = vrot.lane.b32.xlu0 %v340, 116
    %v577 = vpop.permute.xlu0 %576
    %vm579 = vcmp.ge.f32.partialorder %v570, %v577
    %v580 = vsel %vm579, 1.0, 0.0
    %581 = vrot.lane.b32.xlu0 %v347, 116
    %v582 = vpop.permute.xlu0 %581
    %vm584 = vcmp.ge.f32.partialorder %v570, %v582
    %v585 = vsel %vm584, 1.0, 0.0
    %586 = vrot.lane.b32.xlu0 %v354, 116
    %v587 = vpop.permute.xlu0 %586
    %vm589 = vcmp.ge.f32.partialorder %v570, %v587
    %v590 = vsel %vm589, 1.0, 0.0
    %v591 = vsub.f32 1.0, %v575
    %v592 = vsub.f32 %v575, %v580
    %v593 = vsub.f32 %v580, %v585
    %v594 = vsub.f32 %v585, %v590
    %v595 = vmul.f32 %v591, -3.0
    %v596 = vmul.f32 %v592, %v572
    %v597 = vadd.f32 %v595, %v596
    %v598 = vmul.f32 %v593, %v577
    %v599 = vadd.f32 %v597, %v598
    %v600 = vmul.f32 %v594, %v582
    %v601 = vadd.f32 %v599, %v600
    %v602 = vmul.f32 %v590, %v587
    %v603 = vadd.f32 %v601, %v602
    %v604 = vmul.f32 %v590, 3.0
    %v605 = vmul.f32 %v591, %v572
    %v606 = vadd.f32 %v604, %v605
    %v607 = vmul.f32 %v592, %v577
    %v608 = vadd.f32 %v606, %v607
    %v609 = vmul.f32 %v593, %v582
    %v610 = vadd.f32 %v608, %v609
    %v611 = vmul.f32 %v594, %v587
    %v612 = vadd.f32 %v610, %v611
    %v613 = vsub.f32 %v612, %v603
    %614 = vrot.lane.b32.xlu0 %v333, 108
    %v615 = vpop.permute.xlu0 %614
    %v617 = vmul.f32 %v592, %v615
    %v618 = vadd.f32 %v595, %v617
    %619 = vrot.lane.b32.xlu0 %v340, 108
    %v620 = vpop.permute.xlu0 %619
    %v622 = vmul.f32 %v593, %v620
    %v623 = vadd.f32 %v618, %v622
    %624 = vrot.lane.b32.xlu0 %v347, 108
    %v625 = vpop.permute.xlu0 %624
    %v627 = vmul.f32 %v594, %v625
    %v628 = vadd.f32 %v623, %v627
    %629 = vrot.lane.b32.xlu0 %v354, 108
    %v630 = vpop.permute.xlu0 %629
    %v632 = vmul.f32 %v590, %v630
    %v633 = vadd.f32 %v628, %v632
    %v634 = vmul.f32 %v591, %v615
    %v635 = vadd.f32 %v604, %v634
    %v636 = vmul.f32 %v592, %v620
    %v637 = vadd.f32 %v635, %v636
    %v638 = vmul.f32 %v593, %v625
    %v639 = vadd.f32 %v637, %v638
    %v640 = vmul.f32 %v594, %v630
    %v641 = vadd.f32 %v639, %v640
    %v642 = vsub.f32 %v641, %v633
    %643 = vrot.lane.b32.xlu0 %v391, 36
    %v644 = vpop.permute.xlu0 %643
    %v646 = vmul.f32 %v592, %v644
    %v647 = vadd.f32 %v591, %v646
    %648 = vrot.lane.b32.xlu0 %v391, 28
    %v649 = vpop.permute.xlu0 %648
    %v651 = vmul.f32 %v593, %v649
    %v652 = vadd.f32 %v647, %v651
    %653 = vrot.lane.b32.xlu0 %v391, 20
    %v654 = vpop.permute.xlu0 %653
    %v656 = vmul.f32 %v594, %v654
    %v657 = vadd.f32 %v652, %v656
    %658 = vrot.lane.b32.xlu0 %v391, 12
    %v659 = vpop.permute.xlu0 %658
    %v661 = vmul.f32 %v590, %v659
    %v662 = vadd.f32 %v657, %v661
    %v663 = vmul.f32 %v591, %v644
    %v664 = vadd.f32 %v590, %v663
    %v665 = vmul.f32 %v592, %v649
    %v666 = vadd.f32 %v664, %v665
    %v667 = vmul.f32 %v593, %v654
    %v668 = vadd.f32 %v666, %v667
    %v669 = vmul.f32 %v594, %v659
    %v670 = vadd.f32 %v668, %v669
    %v671 = vrcp.pop %v613
    %v672 = vmul.f32 %v613, %v671
    %v673 = vsub.f32 1.0, %v672
    %v674 = vmul.f32 %v671, %v673
    %v675 = vadd.f32 %v671, %v674
    %vm676 = vweird.f32 %v613
    %vm677 = vweird.f32 %v671
    %vm678 = vmor %vm676, %vm677
    %v679 = vsel %vm678, %v671, %v675
    %v680 = vand.u32 2147483647, %v613
    %vm681 = vcmp.eq.f32.partialorder %v680, 8.507059e+37
    %v682 = vand.u32 %v613, 2147483648
    %v683 = vor.u32 1.1754944e-38, %v682
    %v684 = vsel %vm681, %v683, %v679
    %v685 = vmul.f32 1.0, %v684
    %v686 = vmul.f32 %v642, %v685
    %v687 = vsub.f32 %v570, %v603
    %v688 = vmul.f32 %v687, %v685
    %v689 = vsub.f32 1.0, %v688
    %v690 = vmul.f32 %v688, %v689
    %v691 = vmul.f32 %v686, %v688
    %v692 = vmul.f32 %v691, %v688
    %v693 = vmul.f32 %v662, %v690
    %v694 = vadd.f32 %v692, %v693
    %v695 = vmul.f32 %v642, %v694
    %v696 = vadd.f32 %v662, %v670
    %v697 = vmul.f32 %v686, 2.0
    %v698 = vsub.f32 %v696, %v697
    %v699 = vmul.f32 %v698, %v690
    %v700 = vadd.f32 %v686, %v699
    %v701 = vrcp.pop %v700
    %v702 = vmul.f32 %v700, %v701
    %v703 = vsub.f32 1.0, %v702
    %v704 = vmul.f32 %v701, %v703
    %v705 = vadd.f32 %v701, %v704
    %vm706 = vweird.f32 %v700
    %vm707 = vweird.f32 %v701
    %vm708 = vmor %vm706, %vm707
    %v709 = vsel %vm708, %v701, %v705
    %v710 = vand.u32 2147483647, %v700
    %vm711 = vcmp.eq.f32.partialorder %v710, 8.507059e+37
    %v712 = vand.u32 %v700, 2147483648
    %v713 = vor.u32 1.1754944e-38, %v712
    %v714 = vsel %vm711, %v713, %v709
    %v715 = vmul.f32 %v695, %v714
    %v716 = vadd.f32 %v633, %v715
    %v717 = vmul.f32 %v686, %v686
    %v718 = vmul.f32 %v670, %v688
    %v719 = vmul.f32 %v718, %v688
    %v720 = vmul.f32 %v697, %v690
    %v721 = vadd.f32 %v719, %v720
    %v722 = vmul.f32 %v662, %v689
    %v723 = vmul.f32 %v722, %v689
    %v724 = vadd.f32 %v721, %v723
    %v725 = vmul.f32 %v717, %v724
    %v726 = vlog2.pop %v725
    %v727 = vmul.f32 %v726, 0.6931472
    %v728 = vlog2.pop %v700
    %v729 = vmul.f32 %v728, 0.6931472
    %v730 = vmul.f32 %v729, 2.0
    %v731 = vsub.f32 %v727, %v730
    %v732 = vsel %vm568, %v716, %v563
    %v733 = vsel %vm568, %v731, 0.0
    %v734 = vadd.f32 %v565, %v733
    %v735 = vsub.f32 0.0, %v169
    %v736 = vmul.f32 %v735, 1.442695
    %v737 = vpow.pop %v736
    %v738 = vsub.f32 %v169, %v732
    %740 = vrot.lane.b32.xlu0 %v737, 124
    %v741 = vpop.permute.xlu0 %740
    %v743 = vmul.f32 %v738, %v741
    %v744 = vmul.f32 %v743, 1.442695
    %v745 = vpow.pop %v744
    %v746 = vsub.f32 %v743, %v745
    %747 = vrot.lane.b32.xlu0 %v169, 124
    %v748 = vpop.permute.xlu0 %747
    %v750 = vsub.f32 %v746, %v748
    %vm751 = vcmp.ne.f32.partialorder %v750, %v750
    %v752 = vand.u32 2147483647, %v750
    %vm753 = vcmp.eq.f32.partialorder %v752, inf
    %vm754 = vmor %vm751, %vm753
    %v755 = vsel %vm754, -100.0, %v750
    %v756 = vadd.f32 %v734, %v755
    %v757 = vsel %vm69, %v756, 0.0
    %758 = vadd.xlane.f32.xlu0 %v757
    %v759 = vpop.xlane.xlu0 %758
    %vm760 = vcmask 7168
    %761 = vst.msk [vmem:[%s3] sm:$0xff] %vm760, %v759
    // Predicated region
    $region18: #{tpu_custom_call.1} parent=1 // pred_check
      _
    $region19: #{tpu_custom_call.1} parent=1 // pred_check_branch
      %763 = sbr.rel (0) target = $region21
    $region20: #{tpu_custom_call.1} parent=1 // pred_region
      _
    $region21: #{tpu_custom_call.1} parent=1 // pred_fallthru
      _
    // Predicated region
    $region22: #{tpu_custom_call.1} parent=1 // pred_check
      _
    $region23: #{tpu_custom_call.1} parent=1 // pred_check_branch
      %765 = sbr.rel (0) target = $region25
    $region24: #{tpu_custom_call.1} parent=1 // pred_region
      _
    $region25: #{tpu_custom_call.1} parent=1 // pred_fallthru
      _
    %766 = vsyncpa [#allocation3], 1

</llo_original>
